<compile_context>
chip_gen: v7x
topology: tpu7x:2x2x1
jax: 0.10.0
libtpu: 0.0.40
codegen_flags: <defaults>
</compile_context>

<pallas_src>
from functools import partial

import jax
import jax.numpy as jnp
from jax import lax
from jax.experimental import pallas as pl
from jax.experimental.pallas import tpu as pltpu


def _attention_kernel(x_ref, wq_ref, wk_ref, wv_ref, wo_ref, b_ref, o_ref, *,
                      scale, heads):
    # x_ref:  (1, N, D)        per-batch activations
    # wq_ref: (heads, D, d)    per-head Q projection
    # wk_ref: (heads, D, d)
    # wv_ref: (heads, D, d)
    # wo_ref: (heads, d, D)    per-head slice of the output projection
    # b_ref:  (1, D)
    # o_ref:  (1, N, D)
    x = x_ref[0]                                                        # (N, D)

    acc = None
    for h in range(heads):                                              # static unroll
        q = jnp.dot(x, wq_ref[h], preferred_element_type=jnp.float32)   # (N, d)
        k = jnp.dot(x, wk_ref[h], preferred_element_type=jnp.float32)   # (N, d)
        v = jnp.dot(x, wv_ref[h], preferred_element_type=jnp.float32)   # (N, d)

        # scores = (q @ k^T) * scale, transpose folded into the contraction.
        s = lax.dot_general(q, k, (((1,), (1,)), ((), ())),
                            preferred_element_type=jnp.float32) * scale  # (N, N)

        # Numerically-stable softmax along the key axis (matches jax.nn.softmax).
        m = jnp.max(s, axis=-1, keepdims=True)
        p = jnp.exp(s - m)
        attn = p / jnp.sum(p, axis=-1, keepdims=True)

        ctx = jnp.dot(attn, v, preferred_element_type=jnp.float32)       # (N, d)

        # Per-head output projection, accumulated lane-dense in D.
        head_out = jnp.dot(ctx, wo_ref[h],
                           preferred_element_type=jnp.float32)           # (N, D)
        acc = head_out if acc is None else acc + head_out

    o_ref[0] = (acc + b_ref[...]).astype(o_ref.dtype)


def attention_forward(x, w_qkv, w_out, b_out, *, heads, dim_head):
    """x: (B, N, D); w_qkv: (D, 3*inner); w_out: (inner, D); b_out: (D,).

    Weights are stored in (in, out) layout (PyTorch nn.Linear weight transposed),
    so y = x @ W + b matches the module exactly.
    """
    B, N, D = x.shape
    inner = heads * dim_head
    scale = float(dim_head) ** -0.5

    # One-time weight prep (static layout plumbing, outside the kernel):
    # split QKV and go head-major so head selection is a leading-axis slice.
    def head_major(w):                                   # (D, inner) -> (heads, D, d)
        return w.reshape(D, heads, dim_head).transpose(1, 0, 2)

    w_q = head_major(w_qkv[:, 0 * inner:1 * inner])
    w_k = head_major(w_qkv[:, 1 * inner:2 * inner])
    w_v = head_major(w_qkv[:, 2 * inner:3 * inner])
    w_o = w_out.reshape(heads, dim_head, D)              # per-head W_out slices
    b_o = b_out.reshape(1, D)

    kernel = partial(_attention_kernel, scale=scale, heads=heads)

    return pl.pallas_call(
        kernel,
        out_shape=jax.ShapeDtypeStruct((B, N, D), x.dtype),
        grid=(B,),
        in_specs=[
            pl.BlockSpec((1, N, D), lambda b: (b, 0, 0)),            # x[b]
            pl.BlockSpec((heads, D, dim_head), lambda b: (0, 0, 0)),  # W_q (all heads)
            pl.BlockSpec((heads, D, dim_head), lambda b: (0, 0, 0)),  # W_k
            pl.BlockSpec((heads, D, dim_head), lambda b: (0, 0, 0)),  # W_v
            pl.BlockSpec((heads, dim_head, D), lambda b: (0, 0, 0)),  # W_out
            pl.BlockSpec((1, D), lambda b: (0, 0)),                   # bias
        ],
        out_specs=pl.BlockSpec((1, N, D), lambda b: (b, 0, 0)),
        compiler_params=pltpu.CompilerParams(
            dimension_semantics=("parallel",)),
    )(x, w_q, w_k, w_v, w_o, b_o)


def reference_attention(x, w_qkv, w_out, b_out, *, heads, dim_head):
    """Pure-JAX reference mirroring the PyTorch forward (HIGHEST matmul precision)."""
    B, N, D = x.shape
    inner = heads * dim_head
    scale = float(dim_head) ** -0.5
    hi = lax.Precision.HIGHEST

    qkv = jnp.dot(x, w_qkv, precision=hi)                    # (B, N, 3*inner)
    q, k, v = jnp.split(qkv, 3, axis=-1)

    def to_heads(t):
        return t.reshape(B, N, heads, dim_head).transpose(0, 2, 1, 3)  # (B, H, N, d)

    q, k, v = map(to_heads, (q, k, v))
    dots = jnp.einsum('bhnd,bhmd->bhnm', q, k, precision=hi) * scale
    attn = jax.nn.softmax(dots, axis=-1)
    out = jnp.einsum('bhnm,bhmd->bhnd', attn, v, precision=hi)
    out = out.transpose(0, 2, 1, 3).reshape(B, N, inner)
    return jnp.dot(out, w_out, precision=hi) + b_out


if __name__ == "__main__":
    # Small shapes consistent with the module: dim=32, heads=4, dim_head=16 -> inner_dim=64.
    B, N, D = 2, 8, 32
    heads, dim_head = 4, 16
    inner = heads * dim_head

    key = jax.random.PRNGKey(0)
    kx, kq, kw, kb = jax.random.split(key, 4)

    x = jax.random.normal(kx, (B, N, D), dtype=jnp.float32)

    # PyTorch Linear weights are (out, in); we store the transposed (in, out) layout.
    w_qkv = jax.random.normal(kq, (D, 3 * inner), dtype=jnp.float32) * (1.0 / D ** 0.5)
    w_out = jax.random.normal(kw, (inner, D), dtype=jnp.float32) * (1.0 / inner ** 0.5)
    b_out = jax.random.normal(kb, (D,), dtype=jnp.float32) * 0.01
    # Note: dropout=0.0 in the module -> nn.Dropout is identity at inference -> omitted.

    out = attention_forward(x, w_qkv, w_out, b_out, heads=heads, dim_head=dim_head)
    out = jax.block_until_ready(out)

    ref = reference_attention(x, w_qkv, w_out, b_out, heads=heads, dim_head=dim_head)
    assert out.shape == (B, N, D)
    # Tolerance absorbs MXU pass-count / accumulation-order differences (<~1%)
    # between the kernel and the XLA reference; a semantic bug would be O(1).
    assert jnp.allclose(out, ref, atol=2e-2, rtol=2e-2), "mismatch vs reference"

    print("KERNEL_OK")
</pallas_src>

<mosaic_0001>
module attributes {stable_mosaic.version = 11 : i64} {
  func.func @_attention_kernel(%arg0: i32, %arg1: memref<1x8x32xf32, #tpu.memory_space<vmem>>, %arg2: memref<4x32x16xf32, #tpu.memory_space<vmem>>, %arg3: memref<4x32x16xf32, #tpu.memory_space<vmem>>, %arg4: memref<4x32x16xf32, #tpu.memory_space<vmem>>, %arg5: memref<4x16x32xf32, #tpu.memory_space<vmem>>, %arg6: memref<1x32xf32, #tpu.memory_space<vmem>>, %arg7: memref<1x8x32xf32, #tpu.memory_space<vmem>>) attributes {dimension_semantics = [#tpu.dimension_semantics<parallel>], iteration_bounds = array<i64: 2>, scalar_prefetch = 0 : i64, scratch_operands = 0 : i64, tpu.core_type = #tpu.core_type<tc>, window_params = [{transform_indices = @transform_0, window_bounds = array<i64: 1, 8, 32>}, {pipeline_mode = #tpu.pipeline_mode<synchronous>, transform_indices = @transform_1, window_bounds = array<i64: 4, 32, 16>}, {pipeline_mode = #tpu.pipeline_mode<synchronous>, transform_indices = @transform_2, window_bounds = array<i64: 4, 32, 16>}, {pipeline_mode = #tpu.pipeline_mode<synchronous>, transform_indices = @transform_3, window_bounds = array<i64: 4, 32, 16>}, {pipeline_mode = #tpu.pipeline_mode<synchronous>, transform_indices = @transform_4, window_bounds = array<i64: 4, 16, 32>}, {pipeline_mode = #tpu.pipeline_mode<synchronous>, transform_indices = @transform_5, window_bounds = array<i64: 1, 32>}, {transform_indices = @transform_6, window_bounds = array<i64: 1, 8, 32>}]} {
    %c0 = arith.constant 0 : index
    %c0_0 = arith.constant 0 : index
    %c0_1 = arith.constant 0 : index
    %0 = vector.load %arg1[%c0, %c0_0, %c0_1] : memref<1x8x32xf32, #tpu.memory_space<vmem>>, vector<1x8x32xf32>
    %1 = vector.shape_cast %0 : vector<1x8x32xf32> to vector<8x32xf32>
    %c0_2 = arith.constant 0 : index
    %c0_3 = arith.constant 0 : index
    %c0_4 = arith.constant 0 : index
    %2 = vector.load %arg2[%c0_2, %c0_3, %c0_4] : memref<4x32x16xf32, #tpu.memory_space<vmem>>, vector<1x32x16xf32>
    %3 = vector.shape_cast %2 : vector<1x32x16xf32> to vector<32x16xf32>
    %cst = arith.constant dense<0.000000e+00> : vector<8x16xf32>
    %4 = tpu.matmul %1, %3, %cst {dimension_numbers = #tpu.dot_dimension_numbers<[1], [0], [0], [1], [0, 0, 1, 1], [], []>} : vector<8x32xf32>, vector<32x16xf32>, vector<8x16xf32> -> vector<8x16xf32>
    %c0_5 = arith.constant 0 : index
    %c0_6 = arith.constant 0 : index
    %c0_7 = arith.constant 0 : index
    %5 = vector.load %arg3[%c0_5, %c0_6, %c0_7] : memref<4x32x16xf32, #tpu.memory_space<vmem>>, vector<1x32x16xf32>
    %6 = vector.shape_cast %5 : vector<1x32x16xf32> to vector<32x16xf32>
    %cst_8 = arith.constant dense<0.000000e+00> : vector<8x16xf32>
    %7 = tpu.matmul %1, %6, %cst_8 {dimension_numbers = #tpu.dot_dimension_numbers<[1], [0], [0], [1], [0, 0, 1, 1], [], []>} : vector<8x32xf32>, vector<32x16xf32>, vector<8x16xf32> -> vector<8x16xf32>
    %c0_9 = arith.constant 0 : index
    %c0_10 = arith.constant 0 : index
    %c0_11 = arith.constant 0 : index
    %8 = vector.load %arg4[%c0_9, %c0_10, %c0_11] : memref<4x32x16xf32, #tpu.memory_space<vmem>>, vector<1x32x16xf32>
    %9 = vector.shape_cast %8 : vector<1x32x16xf32> to vector<32x16xf32>
    %cst_12 = arith.constant dense<0.000000e+00> : vector<8x16xf32>
    %10 = tpu.matmul %1, %9, %cst_12 {dimension_numbers = #tpu.dot_dimension_numbers<[1], [0], [0], [1], [0, 0, 1, 1], [], []>} : vector<8x32xf32>, vector<32x16xf32>, vector<8x16xf32> -> vector<8x16xf32>
    %cst_13 = arith.constant dense<0.000000e+00> : vector<8x8xf32>
    %11 = tpu.matmul %4, %7, %cst_13 {dimension_numbers = #tpu.dot_dimension_numbers<[1], [1], [0], [0], [0, 0, 1, 0], [], []>} : vector<8x16xf32>, vector<8x16xf32>, vector<8x8xf32> -> vector<8x8xf32>
    %cst_14 = arith.constant 2.500000e-01 : f32
    %12 = vector.broadcast %cst_14 : f32 to vector<8x8xf32>
    %13 = arith.mulf %11, %12 : vector<8x8xf32>
    %cst_15 = arith.constant dense<0xFF800000> : vector<8xf32>
    %14 = vector.multi_reduction <maximumf>, %13, %cst_15 [1] : vector<8x8xf32> to vector<8xf32>
    %15 = vector.shape_cast %14 : vector<8xf32> to vector<8x1xf32>
    %16 = vector.broadcast %15 : vector<8x1xf32> to vector<8x8xf32>
    %17 = arith.subf %13, %16 : vector<8x8xf32>
    %18 = math.exp %17 : vector<8x8xf32>
    %cst_16 = arith.constant dense<0.000000e+00> : vector<8xf32>
    %19 = vector.multi_reduction <add>, %18, %cst_16 [1] : vector<8x8xf32> to vector<8xf32>
    %20 = vector.shape_cast %19 : vector<8xf32> to vector<8x1xf32>
    %21 = vector.broadcast %20 : vector<8x1xf32> to vector<8x8xf32>
    %22 = arith.divf %18, %21 : vector<8x8xf32>
    %cst_17 = arith.constant dense<0.000000e+00> : vector<8x16xf32>
    %23 = tpu.matmul %22, %10, %cst_17 {dimension_numbers = #tpu.dot_dimension_numbers<[1], [0], [0], [1], [0, 0, 1, 1], [], []>} : vector<8x8xf32>, vector<8x16xf32>, vector<8x16xf32> -> vector<8x16xf32>
    %c0_18 = arith.constant 0 : index
    %c0_19 = arith.constant 0 : index
    %c0_20 = arith.constant 0 : index
    %24 = vector.load %arg5[%c0_18, %c0_19, %c0_20] : memref<4x16x32xf32, #tpu.memory_space<vmem>>, vector<1x16x32xf32>
    %25 = vector.shape_cast %24 : vector<1x16x32xf32> to vector<16x32xf32>
    %cst_21 = arith.constant dense<0.000000e+00> : vector<8x32xf32>
    %26 = tpu.matmul %23, %25, %cst_21 {dimension_numbers = #tpu.dot_dimension_numbers<[1], [0], [0], [1], [0, 0, 1, 1], [], []>} : vector<8x16xf32>, vector<16x32xf32>, vector<8x32xf32> -> vector<8x32xf32>
    %c1 = arith.constant 1 : index
    %c0_22 = arith.constant 0 : index
    %c0_23 = arith.constant 0 : index
    %27 = vector.load %arg2[%c1, %c0_22, %c0_23] : memref<4x32x16xf32, #tpu.memory_space<vmem>>, vector<1x32x16xf32>
    %28 = vector.shape_cast %27 : vector<1x32x16xf32> to vector<32x16xf32>
    %cst_24 = arith.constant dense<0.000000e+00> : vector<8x16xf32>
    %29 = tpu.matmul %1, %28, %cst_24 {dimension_numbers = #tpu.dot_dimension_numbers<[1], [0], [0], [1], [0, 0, 1, 1], [], []>} : vector<8x32xf32>, vector<32x16xf32>, vector<8x16xf32> -> vector<8x16xf32>
    %c1_25 = arith.constant 1 : index
    %c0_26 = arith.constant 0 : index
    %c0_27 = arith.constant 0 : index
    %30 = vector.load %arg3[%c1_25, %c0_26, %c0_27] : memref<4x32x16xf32, #tpu.memory_space<vmem>>, vector<1x32x16xf32>
    %31 = vector.shape_cast %30 : vector<1x32x16xf32> to vector<32x16xf32>
    %cst_28 = arith.constant dense<0.000000e+00> : vector<8x16xf32>
    %32 = tpu.matmul %1, %31, %cst_28 {dimension_numbers = #tpu.dot_dimension_numbers<[1], [0], [0], [1], [0, 0, 1, 1], [], []>} : vector<8x32xf32>, vector<32x16xf32>, vector<8x16xf32> -> vector<8x16xf32>
    %c1_29 = arith.constant 1 : index
    %c0_30 = arith.constant 0 : index
    %c0_31 = arith.constant 0 : index
    %33 = vector.load %arg4[%c1_29, %c0_30, %c0_31] : memref<4x32x16xf32, #tpu.memory_space<vmem>>, vector<1x32x16xf32>
    %34 = vector.shape_cast %33 : vector<1x32x16xf32> to vector<32x16xf32>
    %cst_32 = arith.constant dense<0.000000e+00> : vector<8x16xf32>
    %35 = tpu.matmul %1, %34, %cst_32 {dimension_numbers = #tpu.dot_dimension_numbers<[1], [0], [0], [1], [0, 0, 1, 1], [], []>} : vector<8x32xf32>, vector<32x16xf32>, vector<8x16xf32> -> vector<8x16xf32>
    %cst_33 = arith.constant dense<0.000000e+00> : vector<8x8xf32>
    %36 = tpu.matmul %29, %32, %cst_33 {dimension_numbers = #tpu.dot_dimension_numbers<[1], [1], [0], [0], [0, 0, 1, 0], [], []>} : vector<8x16xf32>, vector<8x16xf32>, vector<8x8xf32> -> vector<8x8xf32>
    %cst_34 = arith.constant 2.500000e-01 : f32
    %37 = vector.broadcast %cst_34 : f32 to vector<8x8xf32>
    %38 = arith.mulf %36, %37 : vector<8x8xf32>
    %cst_35 = arith.constant dense<0xFF800000> : vector<8xf32>
    %39 = vector.multi_reduction <maximumf>, %38, %cst_35 [1] : vector<8x8xf32> to vector<8xf32>
    %40 = vector.shape_cast %39 : vector<8xf32> to vector<8x1xf32>
    %41 = vector.broadcast %40 : vector<8x1xf32> to vector<8x8xf32>
    %42 = arith.subf %38, %41 : vector<8x8xf32>
    %43 = math.exp %42 : vector<8x8xf32>
    %cst_36 = arith.constant dense<0.000000e+00> : vector<8xf32>
    %44 = vector.multi_reduction <add>, %43, %cst_36 [1] : vector<8x8xf32> to vector<8xf32>
    %45 = vector.shape_cast %44 : vector<8xf32> to vector<8x1xf32>
    %46 = vector.broadcast %45 : vector<8x1xf32> to vector<8x8xf32>
    %47 = arith.divf %43, %46 : vector<8x8xf32>
    %cst_37 = arith.constant dense<0.000000e+00> : vector<8x16xf32>
    %48 = tpu.matmul %47, %35, %cst_37 {dimension_numbers = #tpu.dot_dimension_numbers<[1], [0], [0], [1], [0, 0, 1, 1], [], []>} : vector<8x8xf32>, vector<8x16xf32>, vector<8x16xf32> -> vector<8x16xf32>
    %c1_38 = arith.constant 1 : index
    %c0_39 = arith.constant 0 : index
    %c0_40 = arith.constant 0 : index
    %49 = vector.load %arg5[%c1_38, %c0_39, %c0_40] : memref<4x16x32xf32, #tpu.memory_space<vmem>>, vector<1x16x32xf32>
    %50 = vector.shape_cast %49 : vector<1x16x32xf32> to vector<16x32xf32>
    %cst_41 = arith.constant dense<0.000000e+00> : vector<8x32xf32>
    %51 = tpu.matmul %48, %50, %cst_41 {dimension_numbers = #tpu.dot_dimension_numbers<[1], [0], [0], [1], [0, 0, 1, 1], [], []>} : vector<8x16xf32>, vector<16x32xf32>, vector<8x32xf32> -> vector<8x32xf32>
    %52 = arith.addf %26, %51 : vector<8x32xf32>
    %c2 = arith.constant 2 : index
    %c0_42 = arith.constant 0 : index
    %c0_43 = arith.constant 0 : index
    %53 = vector.load %arg2[%c2, %c0_42, %c0_43] : memref<4x32x16xf32, #tpu.memory_space<vmem>>, vector<1x32x16xf32>
    %54 = vector.shape_cast %53 : vector<1x32x16xf32> to vector<32x16xf32>
    %cst_44 = arith.constant dense<0.000000e+00> : vector<8x16xf32>
    %55 = tpu.matmul %1, %54, %cst_44 {dimension_numbers = #tpu.dot_dimension_numbers<[1], [0], [0], [1], [0, 0, 1, 1], [], []>} : vector<8x32xf32>, vector<32x16xf32>, vector<8x16xf32> -> vector<8x16xf32>
    %c2_45 = arith.constant 2 : index
    %c0_46 = arith.constant 0 : index
    %c0_47 = arith.constant 0 : index
    %56 = vector.load %arg3[%c2_45, %c0_46, %c0_47] : memref<4x32x16xf32, #tpu.memory_space<vmem>>, vector<1x32x16xf32>
    %57 = vector.shape_cast %56 : vector<1x32x16xf32> to vector<32x16xf32>
    %cst_48 = arith.constant dense<0.000000e+00> : vector<8x16xf32>
    %58 = tpu.matmul %1, %57, %cst_48 {dimension_numbers = #tpu.dot_dimension_numbers<[1], [0], [0], [1], [0, 0, 1, 1], [], []>} : vector<8x32xf32>, vector<32x16xf32>, vector<8x16xf32> -> vector<8x16xf32>
    %c2_49 = arith.constant 2 : index
    %c0_50 = arith.constant 0 : index
    %c0_51 = arith.constant 0 : index
    %59 = vector.load %arg4[%c2_49, %c0_50, %c0_51] : memref<4x32x16xf32, #tpu.memory_space<vmem>>, vector<1x32x16xf32>
    %60 = vector.shape_cast %59 : vector<1x32x16xf32> to vector<32x16xf32>
    %cst_52 = arith.constant dense<0.000000e+00> : vector<8x16xf32>
    %61 = tpu.matmul %1, %60, %cst_52 {dimension_numbers = #tpu.dot_dimension_numbers<[1], [0], [0], [1], [0, 0, 1, 1], [], []>} : vector<8x32xf32>, vector<32x16xf32>, vector<8x16xf32> -> vector<8x16xf32>
    %cst_53 = arith.constant dense<0.000000e+00> : vector<8x8xf32>
    %62 = tpu.matmul %55, %58, %cst_53 {dimension_numbers = #tpu.dot_dimension_numbers<[1], [1], [0], [0], [0, 0, 1, 0], [], []>} : vector<8x16xf32>, vector<8x16xf32>, vector<8x8xf32> -> vector<8x8xf32>
    %cst_54 = arith.constant 2.500000e-01 : f32
    %63 = vector.broadcast %cst_54 : f32 to vector<8x8xf32>
    %64 = arith.mulf %62, %63 : vector<8x8xf32>
    %cst_55 = arith.constant dense<0xFF800000> : vector<8xf32>
    %65 = vector.multi_reduction <maximumf>, %64, %cst_55 [1] : vector<8x8xf32> to vector<8xf32>
    %66 = vector.shape_cast %65 : vector<8xf32> to vector<8x1xf32>
    %67 = vector.broadcast %66 : vector<8x1xf32> to vector<8x8xf32>
    %68 = arith.subf %64, %67 : vector<8x8xf32>
    %69 = math.exp %68 : vector<8x8xf32>
    %cst_56 = arith.constant dense<0.000000e+00> : vector<8xf32>
    %70 = vector.multi_reduction <add>, %69, %cst_56 [1] : vector<8x8xf32> to vector<8xf32>
    %71 = vector.shape_cast %70 : vector<8xf32> to vector<8x1xf32>
    %72 = vector.broadcast %71 : vector<8x1xf32> to vector<8x8xf32>
    %73 = arith.divf %69, %72 : vector<8x8xf32>
    %cst_57 = arith.constant dense<0.000000e+00> : vector<8x16xf32>
    %74 = tpu.matmul %73, %61, %cst_57 {dimension_numbers = #tpu.dot_dimension_numbers<[1], [0], [0], [1], [0, 0, 1, 1], [], []>} : vector<8x8xf32>, vector<8x16xf32>, vector<8x16xf32> -> vector<8x16xf32>
    %c2_58 = arith.constant 2 : index
    %c0_59 = arith.constant 0 : index
    %c0_60 = arith.constant 0 : index
    %75 = vector.load %arg5[%c2_58, %c0_59, %c0_60] : memref<4x16x32xf32, #tpu.memory_space<vmem>>, vector<1x16x32xf32>
    %76 = vector.shape_cast %75 : vector<1x16x32xf32> to vector<16x32xf32>
    %cst_61 = arith.constant dense<0.000000e+00> : vector<8x32xf32>
    %77 = tpu.matmul %74, %76, %cst_61 {dimension_numbers = #tpu.dot_dimension_numbers<[1], [0], [0], [1], [0, 0, 1, 1], [], []>} : vector<8x16xf32>, vector<16x32xf32>, vector<8x32xf32> -> vector<8x32xf32>
    %78 = arith.addf %52, %77 : vector<8x32xf32>
    %c3 = arith.constant 3 : index
    %c0_62 = arith.constant 0 : index
    %c0_63 = arith.constant 0 : index
    %79 = vector.load %arg2[%c3, %c0_62, %c0_63] : memref<4x32x16xf32, #tpu.memory_space<vmem>>, vector<1x32x16xf32>
    %80 = vector.shape_cast %79 : vector<1x32x16xf32> to vector<32x16xf32>
    %cst_64 = arith.constant dense<0.000000e+00> : vector<8x16xf32>
    %81 = tpu.matmul %1, %80, %cst_64 {dimension_numbers = #tpu.dot_dimension_numbers<[1], [0], [0], [1], [0, 0, 1, 1], [], []>} : vector<8x32xf32>, vector<32x16xf32>, vector<8x16xf32> -> vector<8x16xf32>
    %c3_65 = arith.constant 3 : index
    %c0_66 = arith.constant 0 : index
    %c0_67 = arith.constant 0 : index
    %82 = vector.load %arg3[%c3_65, %c0_66, %c0_67] : memref<4x32x16xf32, #tpu.memory_space<vmem>>, vector<1x32x16xf32>
    %83 = vector.shape_cast %82 : vector<1x32x16xf32> to vector<32x16xf32>
    %cst_68 = arith.constant dense<0.000000e+00> : vector<8x16xf32>
    %84 = tpu.matmul %1, %83, %cst_68 {dimension_numbers = #tpu.dot_dimension_numbers<[1], [0], [0], [1], [0, 0, 1, 1], [], []>} : vector<8x32xf32>, vector<32x16xf32>, vector<8x16xf32> -> vector<8x16xf32>
    %c3_69 = arith.constant 3 : index
    %c0_70 = arith.constant 0 : index
    %c0_71 = arith.constant 0 : index
    %85 = vector.load %arg4[%c3_69, %c0_70, %c0_71] : memref<4x32x16xf32, #tpu.memory_space<vmem>>, vector<1x32x16xf32>
    %86 = vector.shape_cast %85 : vector<1x32x16xf32> to vector<32x16xf32>
    %cst_72 = arith.constant dense<0.000000e+00> : vector<8x16xf32>
    %87 = tpu.matmul %1, %86, %cst_72 {dimension_numbers = #tpu.dot_dimension_numbers<[1], [0], [0], [1], [0, 0, 1, 1], [], []>} : vector<8x32xf32>, vector<32x16xf32>, vector<8x16xf32> -> vector<8x16xf32>
    %cst_73 = arith.constant dense<0.000000e+00> : vector<8x8xf32>
    %88 = tpu.matmul %81, %84, %cst_73 {dimension_numbers = #tpu.dot_dimension_numbers<[1], [1], [0], [0], [0, 0, 1, 0], [], []>} : vector<8x16xf32>, vector<8x16xf32>, vector<8x8xf32> -> vector<8x8xf32>
    %cst_74 = arith.constant 2.500000e-01 : f32
    %89 = vector.broadcast %cst_74 : f32 to vector<8x8xf32>
    %90 = arith.mulf %88, %89 : vector<8x8xf32>
    %cst_75 = arith.constant dense<0xFF800000> : vector<8xf32>
    %91 = vector.multi_reduction <maximumf>, %90, %cst_75 [1] : vector<8x8xf32> to vector<8xf32>
    %92 = vector.shape_cast %91 : vector<8xf32> to vector<8x1xf32>
    %93 = vector.broadcast %92 : vector<8x1xf32> to vector<8x8xf32>
    %94 = arith.subf %90, %93 : vector<8x8xf32>
    %95 = math.exp %94 : vector<8x8xf32>
    %cst_76 = arith.constant dense<0.000000e+00> : vector<8xf32>
    %96 = vector.multi_reduction <add>, %95, %cst_76 [1] : vector<8x8xf32> to vector<8xf32>
    %97 = vector.shape_cast %96 : vector<8xf32> to vector<8x1xf32>
    %98 = vector.broadcast %97 : vector<8x1xf32> to vector<8x8xf32>
    %99 = arith.divf %95, %98 : vector<8x8xf32>
    %cst_77 = arith.constant dense<0.000000e+00> : vector<8x16xf32>
    %100 = tpu.matmul %99, %87, %cst_77 {dimension_numbers = #tpu.dot_dimension_numbers<[1], [0], [0], [1], [0, 0, 1, 1], [], []>} : vector<8x8xf32>, vector<8x16xf32>, vector<8x16xf32> -> vector<8x16xf32>
    %c3_78 = arith.constant 3 : index
    %c0_79 = arith.constant 0 : index
    %c0_80 = arith.constant 0 : index
    %101 = vector.load %arg5[%c3_78, %c0_79, %c0_80] : memref<4x16x32xf32, #tpu.memory_space<vmem>>, vector<1x16x32xf32>
    %102 = vector.shape_cast %101 : vector<1x16x32xf32> to vector<16x32xf32>
    %cst_81 = arith.constant dense<0.000000e+00> : vector<8x32xf32>
    %103 = tpu.matmul %100, %102, %cst_81 {dimension_numbers = #tpu.dot_dimension_numbers<[1], [0], [0], [1], [0, 0, 1, 1], [], []>} : vector<8x16xf32>, vector<16x32xf32>, vector<8x32xf32> -> vector<8x32xf32>
    %104 = arith.addf %78, %103 : vector<8x32xf32>
    %c0_82 = arith.constant 0 : index
    %c0_83 = arith.constant 0 : index
    %105 = vector.load %arg6[%c0_82, %c0_83] : memref<1x32xf32, #tpu.memory_space<vmem>>, vector<1x32xf32>
    %106 = vector.broadcast %105 : vector<1x32xf32> to vector<8x32xf32>
    %107 = arith.addf %104, %106 : vector<8x32xf32>
    %c0_84 = arith.constant 0 : index
    %c0_85 = arith.constant 0 : index
    %c0_86 = arith.constant 0 : index
    %108 = vector.load %arg7[%c0_84, %c0_85, %c0_86] : memref<1x8x32xf32, #tpu.memory_space<vmem>>, vector<1x8x32xf32>
    %109 = vector.shape_cast %108 : vector<1x8x32xf32> to vector<8x32xf32>
    %110 = vector.shape_cast %107 : vector<8x32xf32> to vector<1x8x32xf32>
    tpu.vector_store %arg7[%c0_84, %c0_85, %c0_86], %110 {strides = array<i32>} : memref<1x8x32xf32, #tpu.memory_space<vmem>>, vector<1x8x32xf32>,
    return
  }
  func.func @transform_0(%arg0: i32) -> (i32, i32, i32) {
    %c0_i32 = arith.constant 0 : i32
    %c0_i32_0 = arith.constant 0 : i32
    %c0_i32_1 = arith.constant 0 : i32
    return %arg0, %c0_i32, %c0_i32_0 : i32, i32, i32
  }
  func.func @transform_1(%arg0: i32) -> (i32, i32, i32) {
    %c0_i32 = arith.constant 0 : i32
    %c0_i32_0 = arith.constant 0 : i32
    %c0_i32_1 = arith.constant 0 : i32
    %c0_i32_2 = arith.constant 0 : i32
    return %c0_i32, %c0_i32_0, %c0_i32_1 : i32, i32, i32
  }
  func.func @transform_2(%arg0: i32) -> (i32, i32, i32) {
    %c0_i32 = arith.constant 0 : i32
    %c0_i32_0 = arith.constant 0 : i32
    %c0_i32_1 = arith.constant 0 : i32
    %c0_i32_2 = arith.constant 0 : i32
    return %c0_i32, %c0_i32_0, %c0_i32_1 : i32, i32, i32
  }
  func.func @transform_3(%arg0: i32) -> (i32, i32, i32) {
    %c0_i32 = arith.constant 0 : i32
    %c0_i32_0 = arith.constant 0 : i32
    %c0_i32_1 = arith.constant 0 : i32
    %c0_i32_2 = arith.constant 0 : i32
    return %c0_i32, %c0_i32_0, %c0_i32_1 : i32, i32, i32
  }
  func.func @transform_4(%arg0: i32) -> (i32, i32, i32) {
    %c0_i32 = arith.constant 0 : i32
    %c0_i32_0 = arith.constant 0 : i32
    %c0_i32_1 = arith.constant 0 : i32
    %c0_i32_2 = arith.constant 0 : i32
    return %c0_i32, %c0_i32_0, %c0_i32_1 : i32, i32, i32
  }
  func.func @transform_5(%arg0: i32) -> (i32, i32) {
    %c0_i32 = arith.constant 0 : i32
    %c0_i32_0 = arith.constant 0 : i32
    %c0_i32_1 = arith.constant 0 : i32
    return %c0_i32, %c0_i32_0 : i32, i32
  }
  func.func @transform_6(%arg0: i32) -> (i32, i32, i32) {
    %c0_i32 = arith.constant 0 : i32
    %c0_i32_0 = arith.constant 0 : i32
    %c0_i32_1 = arith.constant 0 : i32
    return %arg0, %c0_i32, %c0_i32_0 : i32, i32, i32
  }
}

</mosaic_0001>

<llo_original>
// kernel: tpu_custom_call.1
$region0: #{tpu_custom_call.1}
  #allocation0 [shape = 'u32[]', space=smem, size = 0x4, offset = 0x4, fixed_abs, tag = 'smem constant byte address 0x4 - core index']
  #allocation1 [shape = 'u32[144,128]{1,0:T(1,128)}', space=vmem, size = 0x12000, scoped, tag = 'internal scratch']
  %s0 = inlined_call_operand.vmem [shape: f32[2,8,32], index: 0, kind: input, shape index: {}]
  %s1 = inlined_call_operand.vmem [shape: f32[4,32,16], index: 1, kind: input, shape index: {}]
  %s2 = inlined_call_operand.vmem [shape: f32[4,32,16], index: 2, kind: input, shape index: {}]
  %s3 = inlined_call_operand.vmem [shape: f32[4,32,16], index: 3, kind: input, shape index: {}]
  %s4 = inlined_call_operand.vmem [shape: f32[4,16,32], index: 4, kind: input, shape index: {}]
  %s5 = inlined_call_operand.vmem [shape: f32[1,32], index: 5, kind: input, shape index: {}]
  %s6 = inlined_call_operand.hbm [shape: f32[2,8,32], index: 6, kind: output, shape index: {}]
  %s7 = sld [smem:[#allocation0]]
  $region57: #{tpu_custom_call.1} parent=0
    _
  %s9 = ssub.s32 1, %s7
  %s10 = scalar_select 0, %s9, %s7
  $region1: #{tpu_custom_call.1} parent=0
    #allocation2 [shape = 'u8[8192]{0}', space=vmem, size = 0x2000, scoped, tag = 'output window, operand 0']
    #allocation3 [shape = 's32[2]{0}', space=sflag, size = 0x8, scoped, tag = 'scoped memory for tpu_custom_call.1']
    %11 = vsyncpa [#allocation3], 0
    %s12 = scalar_lea.sflag [#allocation3], 1
    %13 = vsyncpa %s12, 0
    loop: start=0, step=1, limit=4
    $region2: #{tpu_custom_call.1} parent=1 // loop_pre_header
      _
    $region3: #{tpu_custom_call.1} parent=1 // loop_header
      %s15 = sphi 0, %s19
      %p16 = scmp.ge.s32.totalorder %s15, 4
      %s25 = sphi 0, %s27
      %s28 = sphi 0, %s25
      %s29 = sphi 0, %s28
      %s45 = sphi 0, %s29
      %s49 = sphi 0, %s49
      %s51 = sphi 0, %s49
      %s52 = sphi 0, %s51
      %s66 = sphi 0, %s52
      %s70 = sphi 0, %s70
      %s72 = sphi 0, %s70
      %s73 = sphi 0, %s72
      %s87 = sphi 0, %s73
      %s91 = sphi 0, %s91
      %s93 = sphi 0, %s91
      %s94 = sphi 0, %s93
      %s108 = sphi 0, %s94
      %s112 = sphi 0, %s112
      %s114 = sphi 0, %s112
      %s115 = sphi 0, %s114
      %s129 = sphi 0, %s115
      %s133 = sphi 0, %s133
      %s135 = sphi 0, %s133
      %s136 = sphi 0, %s135
      %s150 = sphi 0, %s136
      %s156 = sphi 0, %s158
      %s159 = sphi 0, %s156
      %s160 = sphi 0, %s159
      %s176 = sphi 0, %s160
    $region4: #{tpu_custom_call.1} parent=1 // loop_header_branch
      %18 = sbr.rel (%p16) target = $region8
    $region5: #{tpu_custom_call.1} parent=1 // loop_body
      %s20 = ssub.s32 %s15, 1
      %s21 = ssub.s32 %s15, 2
      %s22 = sadd.s32 %s15, 1
      %s23 = ssub.s32 %s15, %s22
      %p24 = scmp.eq.s32.totalorder %s23, 0
      %s26 = sadd.s32 %s25, 1
      %s27 = scalar_select %p24, %s25, %s26
      %p30 = pneg %p24
      %p31 = scmp.eq.s32.totalorder %s15, 1
      %p32 = por %p30, %p31
      %p33 = scmp.ne.s32.totalorder %s25, %s28
      %p34 = scmp.eq.s32.totalorder %s15, 0
      %p35 = por %p33, %p34
      %p36 = scmp.ne.s32.totalorder %s25, %s28
      %p37 = scmp.eq.s32.totalorder %s20, 1
      %p38 = por %p36, %p37
      %p39 = scmp.ne.s32.totalorder %s28, %s29
      %p40 = scmp.eq.s32.totalorder %s20, 0
      %p41 = por %p39, %p40
      %p42 = scmp.ne.s32.totalorder %s28, %s29
      %p43 = scmp.eq.s32.totalorder %s21, 1
      %p44 = por %p42, %p43
      %p46 = scmp.ne.s32.totalorder %s29, %s45
      %p47 = scmp.eq.s32.totalorder %s21, 0
      %p48 = por %p46, %p47
      %s50 = sadd.s32 %s49, 1
      %p53 = scmp.eq.s32.totalorder %s15, 1
      %p54 = scmp.ne.s32.totalorder %s49, %s51
      %p55 = scmp.eq.s32.totalorder %s15, 0
      %p56 = por %p54, %p55
      %p57 = scmp.ne.s32.totalorder %s49, %s51
      %p58 = scmp.eq.s32.totalorder %s20, 1
      %p59 = por %p57, %p58
      %p60 = scmp.ne.s32.totalorder %s51, %s52
      %p61 = scmp.eq.s32.totalorder %s20, 0
      %p62 = por %p60, %p61
      %p63 = scmp.ne.s32.totalorder %s51, %s52
      %p64 = scmp.eq.s32.totalorder %s21, 1
      %p65 = por %p63, %p64
      %p67 = scmp.ne.s32.totalorder %s52, %s66
      %p68 = scmp.eq.s32.totalorder %s21, 0
      %p69 = por %p67, %p68
      %s71 = sadd.s32 %s70, 1
      %p74 = scmp.eq.s32.totalorder %s15, 1
      %p75 = scmp.ne.s32.totalorder %s70, %s72
      %p76 = scmp.eq.s32.totalorder %s15, 0
      %p77 = por %p75, %p76
      %p78 = scmp.ne.s32.totalorder %s70, %s72
      %p79 = scmp.eq.s32.totalorder %s20, 1
      %p80 = por %p78, %p79
      %p81 = scmp.ne.s32.totalorder %s72, %s73
      %p82 = scmp.eq.s32.totalorder %s20, 0
      %p83 = por %p81, %p82
      %p84 = scmp.ne.s32.totalorder %s72, %s73
      %p85 = scmp.eq.s32.totalorder %s21, 1
      %p86 = por %p84, %p85
      %p88 = scmp.ne.s32.totalorder %s73, %s87
      %p89 = scmp.eq.s32.totalorder %s21, 0
      %p90 = por %p88, %p89
      %s92 = sadd.s32 %s91, 1
      %p95 = scmp.eq.s32.totalorder %s15, 1
      %p96 = scmp.ne.s32.totalorder %s91, %s93
      %p97 = scmp.eq.s32.totalorder %s15, 0
      %p98 = por %p96, %p97
      %p99 = scmp.ne.s32.totalorder %s91, %s93
      %p100 = scmp.eq.s32.totalorder %s20, 1
      %p101 = por %p99, %p100
      %p102 = scmp.ne.s32.totalorder %s93, %s94
      %p103 = scmp.eq.s32.totalorder %s20, 0
      %p104 = por %p102, %p103
      %p105 = scmp.ne.s32.totalorder %s93, %s94
      %p106 = scmp.eq.s32.totalorder %s21, 1
      %p107 = por %p105, %p106
      %p109 = scmp.ne.s32.totalorder %s94, %s108
      %p110 = scmp.eq.s32.totalorder %s21, 0
      %p111 = por %p109, %p110
      %s113 = sadd.s32 %s112, 1
      %p116 = scmp.eq.s32.totalorder %s15, 1
      %p117 = scmp.ne.s32.totalorder %s112, %s114
      %p118 = scmp.eq.s32.totalorder %s15, 0
      %p119 = por %p117, %p118
      %p120 = scmp.ne.s32.totalorder %s112, %s114
      %p121 = scmp.eq.s32.totalorder %s20, 1
      %p122 = por %p120, %p121
      %p123 = scmp.ne.s32.totalorder %s114, %s115
      %p124 = scmp.eq.s32.totalorder %s20, 0
      %p125 = por %p123, %p124
      %p126 = scmp.ne.s32.totalorder %s114, %s115
      %p127 = scmp.eq.s32.totalorder %s21, 1
      %p128 = por %p126, %p127
      %p130 = scmp.ne.s32.totalorder %s115, %s129
      %p131 = scmp.eq.s32.totalorder %s21, 0
      %p132 = por %p130, %p131
      %s134 = sadd.s32 %s133, 1
      %p137 = scmp.eq.s32.totalorder %s15, 1
      %p138 = scmp.ne.s32.totalorder %s133, %s135
      %p139 = scmp.eq.s32.totalorder %s15, 0
      %p140 = por %p138, %p139
      %p141 = scmp.ne.s32.totalorder %s133, %s135
      %p142 = scmp.eq.s32.totalorder %s20, 1
      %p143 = por %p141, %p142
      %p144 = scmp.ne.s32.totalorder %s135, %s136
      %p145 = scmp.eq.s32.totalorder %s20, 0
      %p146 = por %p144, %p145
      %p147 = scmp.ne.s32.totalorder %s135, %s136
      %p148 = scmp.eq.s32.totalorder %s21, 1
      %p149 = por %p147, %p148
      %p151 = scmp.ne.s32.totalorder %s136, %s150
      %p152 = scmp.eq.s32.totalorder %s21, 0
      %p153 = por %p151, %p152
      %s154 = ssub.s32 %s15, %s22
      %p155 = scmp.eq.s32.totalorder %s154, 0
      %s157 = sadd.s32 %s156, 1
      %s158 = scalar_select %p155, %s156, %s157
      %p161 = pneg %p155
      %p162 = scmp.eq.s32.totalorder %s15, 1
      %p163 = por %p161, %p162
      %p164 = scmp.ne.s32.totalorder %s156, %s159
      %p165 = scmp.eq.s32.totalorder %s15, 0
      %p166 = por %p164, %p165
      %p167 = scmp.ne.s32.totalorder %s156, %s159
      %p168 = scmp.eq.s32.totalorder %s20, 1
      %p169 = por %p167, %p168
      %p170 = scmp.ne.s32.totalorder %s159, %s160
      %p171 = scmp.eq.s32.totalorder %s20, 0
      %p172 = por %p170, %p171
      %p173 = scmp.ne.s32.totalorder %s159, %s160
      %p174 = scmp.eq.s32.totalorder %s21, 1
      %p175 = por %p173, %p174
      %p177 = scmp.ne.s32.totalorder %s160, %s176
      %p178 = scmp.eq.s32.totalorder %s21, 0
      %p179 = por %p177, %p178
      %p180 = scmp.le.s32.totalorder 1, %s15
      %p181 = scmp.lt.s32.totalorder %s15, 3
      %p182 = pnand %p180, %p181
      %p183 = pneg %p182
      // Predicated region
      $region9: #{tpu_custom_call.1} parent=5 // pred_check
        _
      $region10: #{tpu_custom_call.1} parent=5 // pred_check_branch
        %185 = sbr.rel (%p182) target = $region12
      $region11: #{tpu_custom_call.1} parent=5 // pred_region
        %s186 = ssub.s32 %s15, 1
        // Predicated region
        $region13: #{tpu_custom_call.1} parent=11 // pred_check
          %p187 = pneg %p62
        $region14: #{tpu_custom_call.1} parent=11 // pred_check_branch
          %189 = sbr.rel (%p187) target = $region16
        $region15: #{tpu_custom_call.1} parent=11 // pred_region
          _
        $region16: #{tpu_custom_call.1} parent=11 // pred_fallthru
          _
        // Predicated region
        $region17: #{tpu_custom_call.1} parent=11 // pred_check
          %p190 = pneg %p83
        $region18: #{tpu_custom_call.1} parent=11 // pred_check_branch
          %192 = sbr.rel (%p190) target = $region20
        $region19: #{tpu_custom_call.1} parent=11 // pred_region
          _
        $region20: #{tpu_custom_call.1} parent=11 // pred_fallthru
          _
        // Predicated region
        $region21: #{tpu_custom_call.1} parent=11 // pred_check
          %p193 = pneg %p104
        $region22: #{tpu_custom_call.1} parent=11 // pred_check_branch
          %195 = sbr.rel (%p193) target = $region24
        $region23: #{tpu_custom_call.1} parent=11 // pred_region
          _
        $region24: #{tpu_custom_call.1} parent=11 // pred_fallthru
          _
        // Predicated region
        $region25: #{tpu_custom_call.1} parent=11 // pred_check
          %p196 = pneg %p125
        $region26: #{tpu_custom_call.1} parent=11 // pred_check_branch
          %198 = sbr.rel (%p196) target = $region28
        $region27: #{tpu_custom_call.1} parent=11 // pred_region
          _
        $region28: #{tpu_custom_call.1} parent=11 // pred_fallthru
          _
        // Predicated region
        $region29: #{tpu_custom_call.1} parent=11 // pred_check
          %p199 = pneg %p146
        $region30: #{tpu_custom_call.1} parent=11 // pred_check_branch
          %201 = sbr.rel (%p199) target = $region32
        $region31: #{tpu_custom_call.1} parent=11 // pred_region
          _
        $region32: #{tpu_custom_call.1} parent=11 // pred_fallthru
          _
      $region12: #{tpu_custom_call.1} parent=5 // pred_fallthru
        _
      %p202 = scmp.lt.s32.totalorder %s15, 2
      // Predicated region
      $region33: #{tpu_custom_call.1} parent=5 // pred_check
        %p203 = pneg %p202
      $region34: #{tpu_custom_call.1} parent=5 // pred_check_branch
        %205 = sbr.rel (%p203) target = $region36
      $region35: #{tpu_custom_call.1} parent=5 // pred_region
        // Predicated region
        $region37: #{tpu_custom_call.1} parent=35 // pred_check
          %p206 = pneg %p35
        $region38: #{tpu_custom_call.1} parent=35 // pred_check_branch
          %208 = sbr.rel (%p206) target = $region40
        $region39: #{tpu_custom_call.1} parent=35 // pred_region
          %p209 = scmp.lt.s32.totalorder %s15, 1
          %s210 = scalar_select %p209, %s15, 1
          %s211 = smul.addr %s210, 8
          %s212 = scalar_lea.vmem %s0, %s211
        $region40: #{tpu_custom_call.1} parent=35 // pred_fallthru
          _
      $region36: #{tpu_custom_call.1} parent=5 // pred_fallthru
        _
      %p213 = scmp.le.s32.totalorder 1, %s15
      %p214 = scmp.lt.s32.totalorder %s15, 3
      %p215 = pnand %p213, %p214
      %p216 = pneg %p215
      // Predicated region
      $region41: #{tpu_custom_call.1} parent=5 // pred_check
        _
      $region42: #{tpu_custom_call.1} parent=5 // pred_check_branch
        %218 = sbr.rel (%p215) target = $region44
      $region43: #{tpu_custom_call.1} parent=5 // pred_region
        %s219 = ssub.s32 %s15, 1
        %p220 = scmp.lt.s32.totalorder %s20, 1
        %s221 = scalar_select %p220, %s20, 1
        %s222 = smul.addr %s221, 8
        %s223 = scalar_lea.vmem %s0, %s222
        %p224 = pneg %p41
        %p225 = pneg %p38
        %p226 = pneg %p62
        %p227 = pneg %p59
        %p228 = pneg %p83
        %p229 = pneg %p80
        %p230 = pneg %p104
        %p231 = pneg %p101
        %p232 = pneg %p125
        %p233 = pneg %p122
        %p234 = pneg %p146
        %p235 = pneg %p143
        %p236 = pneg %p172
        %p237 = pneg %p169
        %s238 = sand.u32 %s159, 1
        %s239 = scalar_lea.sflag [#allocation3], %s238
        %s240 = sand.u32 %s159, 1
        %s241 = smul.addr %s240, 8
        %s242 = scalar_lea.vmem [#allocation2], %s241
        %p243 = scmp.lt.s32.totalorder %s20, 1
        %s244 = scalar_select %p243, %s20, 1
        %s245 = smul.addr %s244, 8
        %s246 = scalar_lea.vmem %s0, %s245
        %v247 = vld [vmem:[%s246] sm:$0xff]
        %v248 = vld [vmem:[%s1] sm:$0xff]
        %v249 = vld [vmem:[%s1 + $0x8] sm:$0xff]
        %v250 = vld [vmem:[%s1 + $0x10] sm:$0xff]
        %v251 = vld [vmem:[%s1 + $0x18] sm:$0xff]
        %vm252 = vcmask 261120
        %v254 = vsel %vm252, %v247, 0
        %256 = vmatprep.subr.mxu0 0.0
        %257 = vmatpush1.msra.mxu0 %v248
        %258 = vmatprep.subr.mxu0 0.0
        %259 = vmatpush1.msra.mxu0 %v249
        %260 = vmatprep.subr.mxu0 0.0
        %261 = vmatpush1.msra.mxu0 %v250
        %262 = vmatprep.subr.mxu0 0.0
        %263 = vmatpush1.msra.mxu0 %v251
        %264 = vmatprep.subr.mxu0 0.0
        %265 = vmatpush1.msra.mxu0 0.0
        %266 = vmatprep.subr.mxu0 0.0
        %267 = vmatpush1.msra.mxu0 0.0
        %268 = vmatprep.subr.mxu0 0.0
        %269 = vmatpush1.msra.mxu0 0.0
        %270 = vmatprep.subr.mxu0 0.0
        %271 = vmatpush1.msra.mxu0 0.0
        %272 = vmatprep.subr.mxu0 0.0
        %273 = vmatpush1.msra.mxu0 0.0
        %274 = vmatprep.subr.mxu0 0.0
        %275 = vmatpush1.msra.mxu0 0.0
        %276 = vmatprep.subr.mxu0 0.0
        %277 = vmatpush1.msra.mxu0 0.0
        %278 = vmatprep.subr.mxu0 0.0
        %279 = vmatpush1.msra.mxu0 0.0
        %280 = vmatprep.subr.mxu0 0.0
        %281 = vmatpush1.msra.mxu0 0.0
        %282 = vmatprep.subr.mxu0 0.0
        %283 = vmatpush1.msra.mxu0 0.0
        %284 = vmatprep.subr.mxu0 0.0
        %285 = vmatpush1.msra.mxu0 0.0
        %286 = vmatprep.subr.mxu0 0.0
        %287 = vmatpush1.msra.mxu0 0.0
        %288 = vmatprep.subr.mxu0 0.0
        %289 = vmatpush1.msra.mxu0 0.0
        %290 = vmatprep.subr.mxu0 0.0
        %291 = vmatpush1.msra.mxu0 0.0
        %292 = vmatprep.subr.mxu0 0.0
        %293 = vmatpush1.msra.mxu0 0.0
        %294 = vmatprep.subr.mxu0 0.0
        %295 = vmatpush1.msra.mxu0 0.0
        %296 = vmatprep.subr.mxu0 0.0
        %297 = vmatpush1.msra.mxu0 0.0
        %298 = vmatprep.subr.mxu0 0.0
        %299 = vmatpush1.msra.mxu0 0.0
        %300 = vmatprep.subr.mxu0 0.0
        %301 = vmatpush1.msra.mxu0 0.0
        %302 = vmatprep.subr.mxu0 0.0
        %303 = vmatpush1.msra.mxu0 0.0
        %304 = vmatprep.subr.mxu0 0.0
        %305 = vmatpush1.msra.mxu0 0.0
        %306 = vmatprep.subr.mxu0 0.0
        %307 = vmatpush1.msra.mxu0 0.0
        %308 = vmatprep.subr.mxu0 0.0
        %309 = vmatpush1.msra.mxu0 0.0
        %310 = vmatprep.subr.mxu0 0.0
        %311 = vmatpush1.msra.mxu0 0.0
        %312 = vmatprep.subr.mxu0 0.0
        %313 = vmatpush1.msra.mxu0 0.0
        %314 = vmatprep.subr.mxu0 0.0
        %315 = vmatpush1.msra.mxu0 0.0
        %316 = vmatprep.subr.mxu0 0.0
        %317 = vmatpush1.msra.mxu0 0.0
        %318 = vmatprep.subr.mxu0 0.0
        %319 = vmatpush1.msra.mxu0 0.0
        %320 = vmatprep.mubr.f32.mxu0 0.0
        %321 = vmatmul.mubr.f32.gmra.mrb[0].mxu0 %v254
        %v322 = vpop.f32.mrb[0].mxu0
        %v323 = vadd.f32 0.0, %v322
        %v324 = vpop.f32.mrb[0].mxu0
        %325 = vdwg.mxu0
        %v326 = vld [vmem:[%s2] sm:$0xff]
        %v327 = vld [vmem:[%s2 + $0x8] sm:$0xff]
        %v328 = vld [vmem:[%s2 + $0x10] sm:$0xff]
        %v329 = vld [vmem:[%s2 + $0x18] sm:$0xff]
        %330 = vmatprep.subr.mxu0 0.0
        %331 = vmatpush1.msra.mxu0 %v326
        %332 = vmatprep.subr.mxu0 0.0
        %333 = vmatpush1.msra.mxu0 %v327
        %334 = vmatprep.subr.mxu0 0.0
        %335 = vmatpush1.msra.mxu0 %v328
        %336 = vmatprep.subr.mxu0 0.0
        %337 = vmatpush1.msra.mxu0 %v329
        %338 = vmatprep.subr.mxu0 0.0
        %339 = vmatpush1.msra.mxu0 0.0
        %340 = vmatprep.subr.mxu0 0.0
        %341 = vmatpush1.msra.mxu0 0.0
        %342 = vmatprep.subr.mxu0 0.0
        %343 = vmatpush1.msra.mxu0 0.0
        %344 = vmatprep.subr.mxu0 0.0
        %345 = vmatpush1.msra.mxu0 0.0
        %346 = vmatprep.subr.mxu0 0.0
        %347 = vmatpush1.msra.mxu0 0.0
        %348 = vmatprep.subr.mxu0 0.0
        %349 = vmatpush1.msra.mxu0 0.0
        %350 = vmatprep.subr.mxu0 0.0
        %351 = vmatpush1.msra.mxu0 0.0
        %352 = vmatprep.subr.mxu0 0.0
        %353 = vmatpush1.msra.mxu0 0.0
        %354 = vmatprep.subr.mxu0 0.0
        %355 = vmatpush1.msra.mxu0 0.0
        %356 = vmatprep.subr.mxu0 0.0
        %357 = vmatpush1.msra.mxu0 0.0
        %358 = vmatprep.subr.mxu0 0.0
        %359 = vmatpush1.msra.mxu0 0.0
        %360 = vmatprep.subr.mxu0 0.0
        %361 = vmatpush1.msra.mxu0 0.0
        %362 = vmatprep.subr.mxu0 0.0
        %363 = vmatpush1.msra.mxu0 0.0
        %364 = vmatprep.subr.mxu0 0.0
        %365 = vmatpush1.msra.mxu0 0.0
        %366 = vmatprep.subr.mxu0 0.0
        %367 = vmatpush1.msra.mxu0 0.0
        %368 = vmatprep.subr.mxu0 0.0
        %369 = vmatpush1.msra.mxu0 0.0
        %370 = vmatprep.subr.mxu0 0.0
        %371 = vmatpush1.msra.mxu0 0.0
        %372 = vmatprep.subr.mxu0 0.0
        %373 = vmatpush1.msra.mxu0 0.0
        %374 = vmatprep.subr.mxu0 0.0
        %375 = vmatpush1.msra.mxu0 0.0
        %376 = vmatprep.subr.mxu0 0.0
        %377 = vmatpush1.msra.mxu0 0.0
        %378 = vmatprep.subr.mxu0 0.0
        %379 = vmatpush1.msra.mxu0 0.0
        %380 = vmatprep.subr.mxu0 0.0
        %381 = vmatpush1.msra.mxu0 0.0
        %382 = vmatprep.subr.mxu0 0.0
        %383 = vmatpush1.msra.mxu0 0.0
        %384 = vmatprep.subr.mxu0 0.0
        %385 = vmatpush1.msra.mxu0 0.0
        %386 = vmatprep.subr.mxu0 0.0
        %387 = vmatpush1.msra.mxu0 0.0
        %388 = vmatprep.subr.mxu0 0.0
        %389 = vmatpush1.msra.mxu0 0.0
        %390 = vmatprep.subr.mxu0 0.0
        %391 = vmatpush1.msra.mxu0 0.0
        %392 = vmatprep.subr.mxu0 0.0
        %393 = vmatpush1.msra.mxu0 0.0
        %394 = vmatprep.mubr.f32.mxu0 0.0
        %395 = vmatmul.mubr.f32.gmra.mrb[0].mxu0 %v254
        %v396 = vpop.f32.mrb[0].mxu0
        %v397 = vadd.f32 0.0, %v396
        %v398 = vpop.f32.mrb[0].mxu0
        %399 = vdwg.mxu0
        %v400 = vld [vmem:[%s3] sm:$0xff]
        %v401 = vld [vmem:[%s3 + $0x8] sm:$0xff]
        %v402 = vld [vmem:[%s3 + $0x10] sm:$0xff]
        %v403 = vld [vmem:[%s3 + $0x18] sm:$0xff]
        %404 = vmatprep.subr.mxu0 0.0
        %405 = vmatpush1.msra.mxu0 %v400
        %406 = vmatprep.subr.mxu0 0.0
        %407 = vmatpush1.msra.mxu0 %v401
        %408 = vmatprep.subr.mxu0 0.0
        %409 = vmatpush1.msra.mxu0 %v402
        %410 = vmatprep.subr.mxu0 0.0
        %411 = vmatpush1.msra.mxu0 %v403
        %412 = vmatprep.subr.mxu0 0.0
        %413 = vmatpush1.msra.mxu0 0.0
        %414 = vmatprep.subr.mxu0 0.0
        %415 = vmatpush1.msra.mxu0 0.0
        %416 = vmatprep.subr.mxu0 0.0
        %417 = vmatpush1.msra.mxu0 0.0
        %418 = vmatprep.subr.mxu0 0.0
        %419 = vmatpush1.msra.mxu0 0.0
        %420 = vmatprep.subr.mxu0 0.0
        %421 = vmatpush1.msra.mxu0 0.0
        %422 = vmatprep.subr.mxu0 0.0
        %423 = vmatpush1.msra.mxu0 0.0
        %424 = vmatprep.subr.mxu0 0.0
        %425 = vmatpush1.msra.mxu0 0.0
        %426 = vmatprep.subr.mxu0 0.0
        %427 = vmatpush1.msra.mxu0 0.0
        %428 = vmatprep.subr.mxu0 0.0
        %429 = vmatpush1.msra.mxu0 0.0
        %430 = vmatprep.subr.mxu0 0.0
        %431 = vmatpush1.msra.mxu0 0.0
        %432 = vmatprep.subr.mxu0 0.0
        %433 = vmatpush1.msra.mxu0 0.0
        %434 = vmatprep.subr.mxu0 0.0
        %435 = vmatpush1.msra.mxu0 0.0
        %436 = vmatprep.subr.mxu0 0.0
        %437 = vmatpush1.msra.mxu0 0.0
        %438 = vmatprep.subr.mxu0 0.0
        %439 = vmatpush1.msra.mxu0 0.0
        %440 = vmatprep.subr.mxu0 0.0
        %441 = vmatpush1.msra.mxu0 0.0
        %442 = vmatprep.subr.mxu0 0.0
        %443 = vmatpush1.msra.mxu0 0.0
        %444 = vmatprep.subr.mxu0 0.0
        %445 = vmatpush1.msra.mxu0 0.0
        %446 = vmatprep.subr.mxu0 0.0
        %447 = vmatpush1.msra.mxu0 0.0
        %448 = vmatprep.subr.mxu0 0.0
        %449 = vmatpush1.msra.mxu0 0.0
        %450 = vmatprep.subr.mxu0 0.0
        %451 = vmatpush1.msra.mxu0 0.0
        %452 = vmatprep.subr.mxu0 0.0
        %453 = vmatpush1.msra.mxu0 0.0
        %454 = vmatprep.subr.mxu0 0.0
        %455 = vmatpush1.msra.mxu0 0.0
        %456 = vmatprep.subr.mxu0 0.0
        %457 = vmatpush1.msra.mxu0 0.0
        %458 = vmatprep.subr.mxu0 0.0
        %459 = vmatpush1.msra.mxu0 0.0
        %460 = vmatprep.subr.mxu0 0.0
        %461 = vmatpush1.msra.mxu0 0.0
        %462 = vmatprep.subr.mxu0 0.0
        %463 = vmatpush1.msra.mxu0 0.0
        %464 = vmatprep.subr.mxu0 0.0
        %465 = vmatpush1.msra.mxu0 0.0
        %466 = vmatprep.subr.mxu0 0.0
        %467 = vmatpush1.msra.mxu0 0.0
        %468 = vmatprep.mubr.f32.mxu0 0.0
        %469 = vmatmul.mubr.f32.gmra.mrb[0].mxu0 %v254
        %v470 = vpop.f32.mrb[0].mxu0
        %v471 = vadd.f32 0.0, %v470
        %v472 = vpop.f32.mrb[0].mxu0
        %473 = vdwg.mxu0
        %vm474 = vcmask 130048
        %v476 = vsel %vm474, %v323, 0
        %v479 = vsel %vm474, %v397, 0
        %481 = vmatprep.subr.mxu0 0.0
        %482 = vmatpush1.xpose.msra.mxu0 %v479
        %483 = vmatprep.subr.mxu0 0.0
        %484 = vmatpush1.xpose.msra.mxu0 0.0
        %485 = vmatprep.subr.mxu0 0.0
        %486 = vmatpush1.xpose.msra.mxu0 0.0
        %487 = vmatprep.subr.mxu0 0.0
        %488 = vmatpush1.xpose.msra.mxu0 0.0
        %489 = vmatprep.subr.mxu0 0.0
        %490 = vmatpush1.xpose.msra.mxu0 0.0
        %491 = vmatprep.subr.mxu0 0.0
        %492 = vmatpush1.xpose.msra.mxu0 0.0
        %493 = vmatprep.subr.mxu0 0.0
        %494 = vmatpush1.xpose.msra.mxu0 0.0
        %495 = vmatprep.subr.mxu0 0.0
        %496 = vmatpush1.xpose.msra.mxu0 0.0
        %497 = vmatprep.subr.mxu0 0.0
        %498 = vmatpush1.xpose.msra.mxu0 0.0
        %499 = vmatprep.subr.mxu0 0.0
        %500 = vmatpush1.xpose.msra.mxu0 0.0
        %501 = vmatprep.subr.mxu0 0.0
        %502 = vmatpush1.xpose.msra.mxu0 0.0
        %503 = vmatprep.subr.mxu0 0.0
        %504 = vmatpush1.xpose.msra.mxu0 0.0
        %505 = vmatprep.subr.mxu0 0.0
        %506 = vmatpush1.xpose.msra.mxu0 0.0
        %507 = vmatprep.subr.mxu0 0.0
        %508 = vmatpush1.xpose.msra.mxu0 0.0
        %509 = vmatprep.subr.mxu0 0.0
        %510 = vmatpush1.xpose.msra.mxu0 0.0
        %511 = vmatprep.subr.mxu0 0.0
        %512 = vmatpush1.xpose.msra.mxu0 0.0
        %513 = vmatprep.subr.mxu0 0.0
        %514 = vmatpush1.xpose.msra.mxu0 0.0
        %515 = vmatprep.subr.mxu0 0.0
        %516 = vmatpush1.xpose.msra.mxu0 0.0
        %517 = vmatprep.subr.mxu0 0.0
        %518 = vmatpush1.xpose.msra.mxu0 0.0
        %519 = vmatprep.subr.mxu0 0.0
        %520 = vmatpush1.xpose.msra.mxu0 0.0
        %521 = vmatprep.subr.mxu0 0.0
        %522 = vmatpush1.xpose.msra.mxu0 0.0
        %523 = vmatprep.subr.mxu0 0.0
        %524 = vmatpush1.xpose.msra.mxu0 0.0
        %525 = vmatprep.subr.mxu0 0.0
        %526 = vmatpush1.xpose.msra.mxu0 0.0
        %527 = vmatprep.subr.mxu0 0.0
        %528 = vmatpush1.xpose.msra.mxu0 0.0
        %529 = vmatprep.subr.mxu0 0.0
        %530 = vmatpush1.xpose.msra.mxu0 0.0
        %531 = vmatprep.subr.mxu0 0.0
        %532 = vmatpush1.xpose.msra.mxu0 0.0
        %533 = vmatprep.subr.mxu0 0.0
        %534 = vmatpush1.xpose.msra.mxu0 0.0
        %535 = vmatprep.subr.mxu0 0.0
        %536 = vmatpush1.xpose.msra.mxu0 0.0
        %537 = vmatprep.subr.mxu0 0.0
        %538 = vmatpush1.xpose.msra.mxu0 0.0
        %539 = vmatprep.subr.mxu0 0.0
        %540 = vmatpush1.xpose.msra.mxu0 0.0
        %541 = vmatprep.subr.mxu0 0.0
        %542 = vmatpush1.xpose.msra.mxu0 0.0
        %543 = vmatprep.subr.mxu0 0.0
        %544 = vmatpush1.xpose.msra.mxu0 0.0
        %545 = vmatprep.mubr.f32.mxu0 0.0
        %546 = vmatmul.mubr.f32.gmra.mrb[0].mxu0 %v476
        %v547 = vpop.f32.mrb[0].mxu0
        %v548 = vadd.f32 0.0, %v547
        %v549 = vpop.f32.mrb[0].mxu0
        %550 = vdwg.mxu0
        %v551 = vmul.f32 %v548, 0.25
        %vm552 = vcmask 64512
        %v553 = vsel %vm552, %v551, -inf
        %554 = vmax.xlane.f32.xlu0 %v553
        %v555 = vpop.xlane.xlu0 %554
        %v556 = vsub.f32 %v551, %v555
        %v557 = vmul.f32 %v556, 1.442695
        %v558 = vpow.pop %v557
        %v559 = vsel %vm552, %v558, 0.0
        %560 = vadd.xlane.f32.xlu0 %v559
        %v561 = vpop.xlane.xlu0 %560
        %v562 = vrcp.pop %v561
        %v563 = vmul.f32 %v558, %v562
        %v565 = vsel %vm552, %v563, 0
        %567 = vmatprep.subr.mxu0 0.0
        %568 = vmatpush1.msra.mxu0 %v471
        %569 = vmatprep.subr.mxu0 0.0
        %570 = vmatpush1.msra.mxu0 0.0
        %571 = vmatprep.subr.mxu0 0.0
        %572 = vmatpush1.msra.mxu0 0.0
        %573 = vmatprep.subr.mxu0 0.0
        %574 = vmatpush1.msra.mxu0 0.0
        %575 = vmatprep.subr.mxu0 0.0
        %576 = vmatpush1.msra.mxu0 0.0
        %577 = vmatprep.subr.mxu0 0.0
        %578 = vmatpush1.msra.mxu0 0.0
        %579 = vmatprep.subr.mxu0 0.0
        %580 = vmatpush1.msra.mxu0 0.0
        %581 = vmatprep.subr.mxu0 0.0
        %582 = vmatpush1.msra.mxu0 0.0
        %583 = vmatprep.subr.mxu0 0.0
        %584 = vmatpush1.msra.mxu0 0.0
        %585 = vmatprep.subr.mxu0 0.0
        %586 = vmatpush1.msra.mxu0 0.0
        %587 = vmatprep.subr.mxu0 0.0
        %588 = vmatpush1.msra.mxu0 0.0
        %589 = vmatprep.subr.mxu0 0.0
        %590 = vmatpush1.msra.mxu0 0.0
        %591 = vmatprep.subr.mxu0 0.0
        %592 = vmatpush1.msra.mxu0 0.0
        %593 = vmatprep.subr.mxu0 0.0
        %594 = vmatpush1.msra.mxu0 0.0
        %595 = vmatprep.subr.mxu0 0.0
        %596 = vmatpush1.msra.mxu0 0.0
        %597 = vmatprep.subr.mxu0 0.0
        %598 = vmatpush1.msra.mxu0 0.0
        %599 = vmatprep.subr.mxu0 0.0
        %600 = vmatpush1.msra.mxu0 0.0
        %601 = vmatprep.subr.mxu0 0.0
        %602 = vmatpush1.msra.mxu0 0.0
        %603 = vmatprep.subr.mxu0 0.0
        %604 = vmatpush1.msra.mxu0 0.0
        %605 = vmatprep.subr.mxu0 0.0
        %606 = vmatpush1.msra.mxu0 0.0
        %607 = vmatprep.subr.mxu0 0.0
        %608 = vmatpush1.msra.mxu0 0.0
        %609 = vmatprep.subr.mxu0 0.0
        %610 = vmatpush1.msra.mxu0 0.0
        %611 = vmatprep.subr.mxu0 0.0
        %612 = vmatpush1.msra.mxu0 0.0
        %613 = vmatprep.subr.mxu0 0.0
        %614 = vmatpush1.msra.mxu0 0.0
        %615 = vmatprep.subr.mxu0 0.0
        %616 = vmatpush1.msra.mxu0 0.0
        %617 = vmatprep.subr.mxu0 0.0
        %618 = vmatpush1.msra.mxu0 0.0
        %619 = vmatprep.subr.mxu0 0.0
        %620 = vmatpush1.msra.mxu0 0.0
        %621 = vmatprep.subr.mxu0 0.0
        %622 = vmatpush1.msra.mxu0 0.0
        %623 = vmatprep.subr.mxu0 0.0
        %624 = vmatpush1.msra.mxu0 0.0
        %625 = vmatprep.subr.mxu0 0.0
        %626 = vmatpush1.msra.mxu0 0.0
        %627 = vmatprep.subr.mxu0 0.0
        %628 = vmatpush1.msra.mxu0 0.0
        %629 = vmatprep.subr.mxu0 0.0
        %630 = vmatpush1.msra.mxu0 0.0
        %631 = vmatprep.mubr.f32.mxu0 0.0
        %632 = vmatmul.mubr.f32.gmra.mrb[0].mxu0 %v565
        %v633 = vpop.f32.mrb[0].mxu0
        %v634 = vadd.f32 0.0, %v633
        %v635 = vpop.f32.mrb[0].mxu0
        %636 = vdwg.mxu0
        %v637 = vld [vmem:[%s4] sm:$0xff]
        %v638 = vld [vmem:[%s4 + $0x8] sm:$0xff]
        %s639 = scalar_lea.vmem %s1, 32
        %v640 = vld [vmem:[%s639] sm:$0xff]
        %v641 = vld [vmem:[%s639 + $0x8] sm:$0xff]
        %v642 = vld [vmem:[%s639 + $0x10] sm:$0xff]
        %v643 = vld [vmem:[%s639 + $0x18] sm:$0xff]
        %644 = vmatprep.subr.mxu0 0.0
        %645 = vmatpush1.msra.mxu0 %v640
        %646 = vmatprep.subr.mxu0 0.0
        %647 = vmatpush1.msra.mxu0 %v641
        %648 = vmatprep.subr.mxu0 0.0
        %649 = vmatpush1.msra.mxu0 %v642
        %650 = vmatprep.subr.mxu0 0.0
        %651 = vmatpush1.msra.mxu0 %v643
        %652 = vmatprep.subr.mxu0 0.0
        %653 = vmatpush1.msra.mxu0 0.0
        %654 = vmatprep.subr.mxu0 0.0
        %655 = vmatpush1.msra.mxu0 0.0
        %656 = vmatprep.subr.mxu0 0.0
        %657 = vmatpush1.msra.mxu0 0.0
        %658 = vmatprep.subr.mxu0 0.0
        %659 = vmatpush1.msra.mxu0 0.0
        %660 = vmatprep.subr.mxu0 0.0
        %661 = vmatpush1.msra.mxu0 0.0
        %662 = vmatprep.subr.mxu0 0.0
        %663 = vmatpush1.msra.mxu0 0.0
        %664 = vmatprep.subr.mxu0 0.0
        %665 = vmatpush1.msra.mxu0 0.0
        %666 = vmatprep.subr.mxu0 0.0
        %667 = vmatpush1.msra.mxu0 0.0
        %668 = vmatprep.subr.mxu0 0.0
        %669 = vmatpush1.msra.mxu0 0.0
        %670 = vmatprep.subr.mxu0 0.0
        %671 = vmatpush1.msra.mxu0 0.0
        %672 = vmatprep.subr.mxu0 0.0
        %673 = vmatpush1.msra.mxu0 0.0
        %674 = vmatprep.subr.mxu0 0.0
        %675 = vmatpush1.msra.mxu0 0.0
        %676 = vmatprep.subr.mxu0 0.0
        %677 = vmatpush1.msra.mxu0 0.0
        %678 = vmatprep.subr.mxu0 0.0
        %679 = vmatpush1.msra.mxu0 0.0
        %680 = vmatprep.subr.mxu0 0.0
        %681 = vmatpush1.msra.mxu0 0.0
        %682 = vmatprep.subr.mxu0 0.0
        %683 = vmatpush1.msra.mxu0 0.0
        %684 = vmatprep.subr.mxu0 0.0
        %685 = vmatpush1.msra.mxu0 0.0
        %686 = vmatprep.subr.mxu0 0.0
        %687 = vmatpush1.msra.mxu0 0.0
        %688 = vmatprep.subr.mxu0 0.0
        %689 = vmatpush1.msra.mxu0 0.0
        %690 = vmatprep.subr.mxu0 0.0
        %691 = vmatpush1.msra.mxu0 0.0
        %692 = vmatprep.subr.mxu0 0.0
        %693 = vmatpush1.msra.mxu0 0.0
        %694 = vmatprep.subr.mxu0 0.0
        %695 = vmatpush1.msra.mxu0 0.0
        %696 = vmatprep.subr.mxu0 0.0
        %697 = vmatpush1.msra.mxu0 0.0
        %698 = vmatprep.subr.mxu0 0.0
        %699 = vmatpush1.msra.mxu0 0.0
        %700 = vmatprep.subr.mxu0 0.0
        %701 = vmatpush1.msra.mxu0 0.0
        %702 = vmatprep.subr.mxu0 0.0
        %703 = vmatpush1.msra.mxu0 0.0
        %704 = vmatprep.subr.mxu0 0.0
        %705 = vmatpush1.msra.mxu0 0.0
        %706 = vmatprep.subr.mxu0 0.0
        %707 = vmatpush1.msra.mxu0 0.0
        %708 = vmatprep.mubr.f32.mxu0 0.0
        %709 = vmatmul.mubr.f32.gmra.mrb[0].mxu0 %v254
        %v710 = vpop.f32.mrb[0].mxu0
        %v711 = vadd.f32 0.0, %v710
        %v712 = vpop.f32.mrb[0].mxu0
        %713 = vdwg.mxu0
        %s714 = scalar_lea.vmem %s2, 32
        %v715 = vld [vmem:[%s714] sm:$0xff]
        %v716 = vld [vmem:[%s714 + $0x8] sm:$0xff]
        %v717 = vld [vmem:[%s714 + $0x10] sm:$0xff]
        %v718 = vld [vmem:[%s714 + $0x18] sm:$0xff]
        %719 = vmatprep.subr.mxu0 0.0
        %720 = vmatpush1.msra.mxu0 %v715
        %721 = vmatprep.subr.mxu0 0.0
        %722 = vmatpush1.msra.mxu0 %v716
        %723 = vmatprep.subr.mxu0 0.0
        %724 = vmatpush1.msra.mxu0 %v717
        %725 = vmatprep.subr.mxu0 0.0
        %726 = vmatpush1.msra.mxu0 %v718
        %727 = vmatprep.subr.mxu0 0.0
        %728 = vmatpush1.msra.mxu0 0.0
        %729 = vmatprep.subr.mxu0 0.0
        %730 = vmatpush1.msra.mxu0 0.0
        %731 = vmatprep.subr.mxu0 0.0
        %732 = vmatpush1.msra.mxu0 0.0
        %733 = vmatprep.subr.mxu0 0.0
        %734 = vmatpush1.msra.mxu0 0.0
        %735 = vmatprep.subr.mxu0 0.0
        %736 = vmatpush1.msra.mxu0 0.0
        %737 = vmatprep.subr.mxu0 0.0
        %738 = vmatpush1.msra.mxu0 0.0
        %739 = vmatprep.subr.mxu0 0.0
        %740 = vmatpush1.msra.mxu0 0.0
        %741 = vmatprep.subr.mxu0 0.0
        %742 = vmatpush1.msra.mxu0 0.0
        %743 = vmatprep.subr.mxu0 0.0
        %744 = vmatpush1.msra.mxu0 0.0
        %745 = vmatprep.subr.mxu0 0.0
        %746 = vmatpush1.msra.mxu0 0.0
        %747 = vmatprep.subr.mxu0 0.0
        %748 = vmatpush1.msra.mxu0 0.0
        %749 = vmatprep.subr.mxu0 0.0
        %750 = vmatpush1.msra.mxu0 0.0
        %751 = vmatprep.subr.mxu0 0.0
        %752 = vmatpush1.msra.mxu0 0.0
        %753 = vmatprep.subr.mxu0 0.0
        %754 = vmatpush1.msra.mxu0 0.0
        %755 = vmatprep.subr.mxu0 0.0
        %756 = vmatpush1.msra.mxu0 0.0
        %757 = vmatprep.subr.mxu0 0.0
        %758 = vmatpush1.msra.mxu0 0.0
        %759 = vmatprep.subr.mxu0 0.0
        %760 = vmatpush1.msra.mxu0 0.0
        %761 = vmatprep.subr.mxu0 0.0
        %762 = vmatpush1.msra.mxu0 0.0
        %763 = vmatprep.subr.mxu0 0.0
        %764 = vmatpush1.msra.mxu0 0.0
        %765 = vmatprep.subr.mxu0 0.0
        %766 = vmatpush1.msra.mxu0 0.0
        %767 = vmatprep.subr.mxu0 0.0
        %768 = vmatpush1.msra.mxu0 0.0
        %769 = vmatprep.subr.mxu0 0.0
        %770 = vmatpush1.msra.mxu0 0.0
        %771 = vmatprep.subr.mxu0 0.0
        %772 = vmatpush1.msra.mxu0 0.0
        %773 = vmatprep.subr.mxu0 0.0
        %774 = vmatpush1.msra.mxu0 0.0
        %775 = vmatprep.subr.mxu0 0.0
        %776 = vmatpush1.msra.mxu0 0.0
        %777 = vmatprep.subr.mxu0 0.0
        %778 = vmatpush1.msra.mxu0 0.0
        %779 = vmatprep.subr.mxu0 0.0
        %780 = vmatpush1.msra.mxu0 0.0
        %781 = vmatprep.subr.mxu0 0.0
        %782 = vmatpush1.msra.mxu0 0.0
        %783 = vmatprep.mubr.f32.mxu0 0.0
        %784 = vmatmul.mubr.f32.gmra.mrb[0].mxu0 %v254
        %v785 = vpop.f32.mrb[0].mxu0
        %v786 = vadd.f32 0.0, %v785
        %v787 = vpop.f32.mrb[0].mxu0
        %788 = vdwg.mxu0
        %s789 = scalar_lea.vmem %s3, 32
        %v790 = vld [vmem:[%s789] sm:$0xff]
        %v791 = vld [vmem:[%s789 + $0x8] sm:$0xff]
        %v792 = vld [vmem:[%s789 + $0x10] sm:$0xff]
        %v793 = vld [vmem:[%s789 + $0x18] sm:$0xff]
        %794 = vmatprep.subr.mxu0 0.0
        %795 = vmatpush1.msra.mxu0 %v790
        %796 = vmatprep.subr.mxu0 0.0
        %797 = vmatpush1.msra.mxu0 %v791
        %798 = vmatprep.subr.mxu0 0.0
        %799 = vmatpush1.msra.mxu0 %v792
        %800 = vmatprep.subr.mxu0 0.0
        %801 = vmatpush1.msra.mxu0 %v793
        %802 = vmatprep.subr.mxu0 0.0
        %803 = vmatpush1.msra.mxu0 0.0
        %804 = vmatprep.subr.mxu0 0.0
        %805 = vmatpush1.msra.mxu0 0.0
        %806 = vmatprep.subr.mxu0 0.0
        %807 = vmatpush1.msra.mxu0 0.0
        %808 = vmatprep.subr.mxu0 0.0
        %809 = vmatpush1.msra.mxu0 0.0
        %810 = vmatprep.subr.mxu0 0.0
        %811 = vmatpush1.msra.mxu0 0.0
        %812 = vmatprep.subr.mxu0 0.0
        %813 = vmatpush1.msra.mxu0 0.0
        %814 = vmatprep.subr.mxu0 0.0
        %815 = vmatpush1.msra.mxu0 0.0
        %816 = vmatprep.subr.mxu0 0.0
        %817 = vmatpush1.msra.mxu0 0.0
        %818 = vmatprep.subr.mxu0 0.0
        %819 = vmatpush1.msra.mxu0 0.0
        %820 = vmatprep.subr.mxu0 0.0
        %821 = vmatpush1.msra.mxu0 0.0
        %822 = vmatprep.subr.mxu0 0.0
        %823 = vmatpush1.msra.mxu0 0.0
        %824 = vmatprep.subr.mxu0 0.0
        %825 = vmatpush1.msra.mxu0 0.0
        %826 = vmatprep.subr.mxu0 0.0
        %827 = vmatpush1.msra.mxu0 0.0
        %828 = vmatprep.subr.mxu0 0.0
        %829 = vmatpush1.msra.mxu0 0.0
        %830 = vmatprep.subr.mxu0 0.0
        %831 = vmatpush1.msra.mxu0 0.0
        %832 = vmatprep.subr.mxu0 0.0
        %833 = vmatpush1.msra.mxu0 0.0
        %834 = vmatprep.subr.mxu0 0.0
        %835 = vmatpush1.msra.mxu0 0.0
        %836 = vmatprep.subr.mxu0 0.0
        %837 = vmatpush1.msra.mxu0 0.0
        %838 = vmatprep.subr.mxu0 0.0
        %839 = vmatpush1.msra.mxu0 0.0
        %840 = vmatprep.subr.mxu0 0.0
        %841 = vmatpush1.msra.mxu0 0.0
        %842 = vmatprep.subr.mxu0 0.0
        %843 = vmatpush1.msra.mxu0 0.0
        %844 = vmatprep.subr.mxu0 0.0
        %845 = vmatpush1.msra.mxu0 0.0
        %846 = vmatprep.subr.mxu0 0.0
        %847 = vmatpush1.msra.mxu0 0.0
        %848 = vmatprep.subr.mxu0 0.0
        %849 = vmatpush1.msra.mxu0 0.0
        %850 = vmatprep.subr.mxu0 0.0
        %851 = vmatpush1.msra.mxu0 0.0
        %852 = vmatprep.subr.mxu0 0.0
        %853 = vmatpush1.msra.mxu0 0.0
        %854 = vmatprep.subr.mxu0 0.0
        %855 = vmatpush1.msra.mxu0 0.0
        %856 = vmatprep.subr.mxu0 0.0
        %857 = vmatpush1.msra.mxu0 0.0
        %858 = vmatprep.mubr.f32.mxu0 0.0
        %859 = vmatmul.mubr.f32.gmra.mrb[0].mxu0 %v254
        %v860 = vpop.f32.mrb[0].mxu0
        %v861 = vadd.f32 0.0, %v860
        %v862 = vpop.f32.mrb[0].mxu0
        %863 = vdwg.mxu0
        %v865 = vsel %vm474, %v711, 0
        %v868 = vsel %vm474, %v786, 0
        %870 = vmatprep.subr.mxu0 0.0
        %871 = vmatpush1.xpose.msra.mxu0 %v868
        %872 = vmatprep.subr.mxu0 0.0
        %873 = vmatpush1.xpose.msra.mxu0 0.0
        %874 = vmatprep.subr.mxu0 0.0
        %875 = vmatpush1.xpose.msra.mxu0 0.0
        %876 = vmatprep.subr.mxu0 0.0
        %877 = vmatpush1.xpose.msra.mxu0 0.0
        %878 = vmatprep.subr.mxu0 0.0
        %879 = vmatpush1.xpose.msra.mxu0 0.0
        %880 = vmatprep.subr.mxu0 0.0
        %881 = vmatpush1.xpose.msra.mxu0 0.0
        %882 = vmatprep.subr.mxu0 0.0
        %883 = vmatpush1.xpose.msra.mxu0 0.0
        %884 = vmatprep.subr.mxu0 0.0
        %885 = vmatpush1.xpose.msra.mxu0 0.0
        %886 = vmatprep.subr.mxu0 0.0
        %887 = vmatpush1.xpose.msra.mxu0 0.0
        %888 = vmatprep.subr.mxu0 0.0
        %889 = vmatpush1.xpose.msra.mxu0 0.0
        %890 = vmatprep.subr.mxu0 0.0
        %891 = vmatpush1.xpose.msra.mxu0 0.0
        %892 = vmatprep.subr.mxu0 0.0
        %893 = vmatpush1.xpose.msra.mxu0 0.0
        %894 = vmatprep.subr.mxu0 0.0
        %895 = vmatpush1.xpose.msra.mxu0 0.0
        %896 = vmatprep.subr.mxu0 0.0
        %897 = vmatpush1.xpose.msra.mxu0 0.0
        %898 = vmatprep.subr.mxu0 0.0
        %899 = vmatpush1.xpose.msra.mxu0 0.0
        %900 = vmatprep.subr.mxu0 0.0
        %901 = vmatpush1.xpose.msra.mxu0 0.0
        %902 = vmatprep.subr.mxu0 0.0
        %903 = vmatpush1.xpose.msra.mxu0 0.0
        %904 = vmatprep.subr.mxu0 0.0
        %905 = vmatpush1.xpose.msra.mxu0 0.0
        %906 = vmatprep.subr.mxu0 0.0
        %907 = vmatpush1.xpose.msra.mxu0 0.0
        %908 = vmatprep.subr.mxu0 0.0
        %909 = vmatpush1.xpose.msra.mxu0 0.0
        %910 = vmatprep.subr.mxu0 0.0
        %911 = vmatpush1.xpose.msra.mxu0 0.0
        %912 = vmatprep.subr.mxu0 0.0
        %913 = vmatpush1.xpose.msra.mxu0 0.0
        %914 = vmatprep.subr.mxu0 0.0
        %915 = vmatpush1.xpose.msra.mxu0 0.0
        %916 = vmatprep.subr.mxu0 0.0
        %917 = vmatpush1.xpose.msra.mxu0 0.0
        %918 = vmatprep.subr.mxu0 0.0
        %919 = vmatpush1.xpose.msra.mxu0 0.0
        %920 = vmatprep.subr.mxu0 0.0
        %921 = vmatpush1.xpose.msra.mxu0 0.0
        %922 = vmatprep.subr.mxu0 0.0
        %923 = vmatpush1.xpose.msra.mxu0 0.0
        %924 = vmatprep.subr.mxu0 0.0
        %925 = vmatpush1.xpose.msra.mxu0 0.0
        %926 = vmatprep.subr.mxu0 0.0
        %927 = vmatpush1.xpose.msra.mxu0 0.0
        %928 = vmatprep.subr.mxu0 0.0
        %929 = vmatpush1.xpose.msra.mxu0 0.0
        %930 = vmatprep.subr.mxu0 0.0
        %931 = vmatpush1.xpose.msra.mxu0 0.0
        %932 = vmatprep.subr.mxu0 0.0
        %933 = vmatpush1.xpose.msra.mxu0 0.0
        %934 = vmatprep.mubr.f32.mxu0 0.0
        %935 = vmatmul.mubr.f32.gmra.mrb[0].mxu0 %v865
        %v936 = vpop.f32.mrb[0].mxu0
        %v937 = vadd.f32 0.0, %v936
        %v938 = vpop.f32.mrb[0].mxu0
        %939 = vdwg.mxu0
        %v940 = vmul.f32 %v937, 0.25
        %v941 = vsel %vm552, %v940, -inf
        %942 = vmax.xlane.f32.xlu0 %v941
        %v943 = vpop.xlane.xlu0 %942
        %v944 = vsub.f32 %v940, %v943
        %v945 = vmul.f32 %v944, 1.442695
        %v946 = vpow.pop %v945
        %v947 = vsel %vm552, %v946, 0.0
        %948 = vadd.xlane.f32.xlu0 %v947
        %v949 = vpop.xlane.xlu0 %948
        %v950 = vrcp.pop %v949
        %v951 = vmul.f32 %v946, %v950
        %v953 = vsel %vm552, %v951, 0
        %955 = vmatprep.subr.mxu0 0.0
        %956 = vmatpush1.msra.mxu0 %v861
        %957 = vmatprep.subr.mxu0 0.0
        %958 = vmatpush1.msra.mxu0 0.0
        %959 = vmatprep.subr.mxu0 0.0
        %960 = vmatpush1.msra.mxu0 0.0
        %961 = vmatprep.subr.mxu0 0.0
        %962 = vmatpush1.msra.mxu0 0.0
        %963 = vmatprep.subr.mxu0 0.0
        %964 = vmatpush1.msra.mxu0 0.0
        %965 = vmatprep.subr.mxu0 0.0
        %966 = vmatpush1.msra.mxu0 0.0
        %967 = vmatprep.subr.mxu0 0.0
        %968 = vmatpush1.msra.mxu0 0.0
        %969 = vmatprep.subr.mxu0 0.0
        %970 = vmatpush1.msra.mxu0 0.0
        %971 = vmatprep.subr.mxu0 0.0
        %972 = vmatpush1.msra.mxu0 0.0
        %973 = vmatprep.subr.mxu0 0.0
        %974 = vmatpush1.msra.mxu0 0.0
        %975 = vmatprep.subr.mxu0 0.0
        %976 = vmatpush1.msra.mxu0 0.0
        %977 = vmatprep.subr.mxu0 0.0
        %978 = vmatpush1.msra.mxu0 0.0
        %979 = vmatprep.subr.mxu0 0.0
        %980 = vmatpush1.msra.mxu0 0.0
        %981 = vmatprep.subr.mxu0 0.0
        %982 = vmatpush1.msra.mxu0 0.0
        %983 = vmatprep.subr.mxu0 0.0
        %984 = vmatpush1.msra.mxu0 0.0
        %985 = vmatprep.subr.mxu0 0.0
        %986 = vmatpush1.msra.mxu0 0.0
        %987 = vmatprep.subr.mxu0 0.0
        %988 = vmatpush1.msra.mxu0 0.0
        %989 = vmatprep.subr.mxu0 0.0
        %990 = vmatpush1.msra.mxu0 0.0
        %991 = vmatprep.subr.mxu0 0.0
        %992 = vmatpush1.msra.mxu0 0.0
        %993 = vmatprep.subr.mxu0 0.0
        %994 = vmatpush1.msra.mxu0 0.0
        %995 = vmatprep.subr.mxu0 0.0
        %996 = vmatpush1.msra.mxu0 0.0
        %997 = vmatprep.subr.mxu0 0.0
        %998 = vmatpush1.msra.mxu0 0.0
        %999 = vmatprep.subr.mxu0 0.0
        %1000 = vmatpush1.msra.mxu0 0.0
        %1001 = vmatprep.subr.mxu0 0.0
        %1002 = vmatpush1.msra.mxu0 0.0
        %1003 = vmatprep.subr.mxu0 0.0
        %1004 = vmatpush1.msra.mxu0 0.0
        %1005 = vmatprep.subr.mxu0 0.0
        %1006 = vmatpush1.msra.mxu0 0.0
        %1007 = vmatprep.subr.mxu0 0.0
        %1008 = vmatpush1.msra.mxu0 0.0
        %1009 = vmatprep.subr.mxu0 0.0
        %1010 = vmatpush1.msra.mxu0 0.0
        %1011 = vmatprep.subr.mxu0 0.0
        %1012 = vmatpush1.msra.mxu0 0.0
        %1013 = vmatprep.subr.mxu0 0.0
        %1014 = vmatpush1.msra.mxu0 0.0
        %1015 = vmatprep.subr.mxu0 0.0
        %1016 = vmatpush1.msra.mxu0 0.0
        %1017 = vmatprep.subr.mxu0 0.0
        %1018 = vmatpush1.msra.mxu0 0.0
        %1019 = vmatprep.mubr.f32.mxu0 0.0
        %1020 = vmatmul.mubr.f32.gmra.mrb[0].mxu0 %v953
        %v1021 = vpop.f32.mrb[0].mxu0
        %v1022 = vadd.f32 0.0, %v1021
        %v1023 = vpop.f32.mrb[0].mxu0
        %1024 = vdwg.mxu0
        %s1025 = scalar_lea.vmem %s4, 16
        %v1026 = vld [vmem:[%s1025] sm:$0xff]
        %v1027 = vld [vmem:[%s1025 + $0x8] sm:$0xff]
        %v1029 = vsel %vm474, %v1022, 0
        %1031 = vmatprep.subr.mxu0 0.0
        %1032 = vmatpush1.msra.mxu0 %v1026
        %1033 = vmatprep.subr.mxu0 0.0
        %1034 = vmatpush1.msra.mxu0 %v1027
        %1035 = vmatprep.subr.mxu0 0.0
        %1036 = vmatpush1.msra.mxu0 0.0
        %1037 = vmatprep.subr.mxu0 0.0
        %1038 = vmatpush1.msra.mxu0 0.0
        %1039 = vmatprep.subr.mxu0 0.0
        %1040 = vmatpush1.msra.mxu0 0.0
        %1041 = vmatprep.subr.mxu0 0.0
        %1042 = vmatpush1.msra.mxu0 0.0
        %1043 = vmatprep.subr.mxu0 0.0
        %1044 = vmatpush1.msra.mxu0 0.0
        %1045 = vmatprep.subr.mxu0 0.0
        %1046 = vmatpush1.msra.mxu0 0.0
        %1047 = vmatprep.subr.mxu0 0.0
        %1048 = vmatpush1.msra.mxu0 0.0
        %1049 = vmatprep.subr.mxu0 0.0
        %1050 = vmatpush1.msra.mxu0 0.0
        %1051 = vmatprep.subr.mxu0 0.0
        %1052 = vmatpush1.msra.mxu0 0.0
        %1053 = vmatprep.subr.mxu0 0.0
        %1054 = vmatpush1.msra.mxu0 0.0
        %1055 = vmatprep.subr.mxu0 0.0
        %1056 = vmatpush1.msra.mxu0 0.0
        %1057 = vmatprep.subr.mxu0 0.0
        %1058 = vmatpush1.msra.mxu0 0.0
        %1059 = vmatprep.subr.mxu0 0.0
        %1060 = vmatpush1.msra.mxu0 0.0
        %1061 = vmatprep.subr.mxu0 0.0
        %1062 = vmatpush1.msra.mxu0 0.0
        %1063 = vmatprep.subr.mxu0 0.0
        %1064 = vmatpush1.msra.mxu0 0.0
        %1065 = vmatprep.subr.mxu0 0.0
        %1066 = vmatpush1.msra.mxu0 0.0
        %1067 = vmatprep.subr.mxu0 0.0
        %1068 = vmatpush1.msra.mxu0 0.0
        %1069 = vmatprep.subr.mxu0 0.0
        %1070 = vmatpush1.msra.mxu0 0.0
        %1071 = vmatprep.subr.mxu0 0.0
        %1072 = vmatpush1.msra.mxu0 0.0
        %1073 = vmatprep.subr.mxu0 0.0
        %1074 = vmatpush1.msra.mxu0 0.0
        %1075 = vmatprep.subr.mxu0 0.0
        %1076 = vmatpush1.msra.mxu0 0.0
        %1077 = vmatprep.subr.mxu0 0.0
        %1078 = vmatpush1.msra.mxu0 0.0
        %1079 = vmatprep.subr.mxu0 0.0
        %1080 = vmatpush1.msra.mxu0 0.0
        %1081 = vmatprep.subr.mxu0 0.0
        %1082 = vmatpush1.msra.mxu0 0.0
        %1083 = vmatprep.subr.mxu0 0.0
        %1084 = vmatpush1.msra.mxu0 0.0
        %1085 = vmatprep.subr.mxu0 0.0
        %1086 = vmatpush1.msra.mxu0 0.0
        %1087 = vmatprep.subr.mxu0 0.0
        %1088 = vmatpush1.msra.mxu0 0.0
        %1089 = vmatprep.subr.mxu0 0.0
        %1090 = vmatpush1.msra.mxu0 0.0
        %1091 = vmatprep.subr.mxu0 0.0
        %1092 = vmatpush1.msra.mxu0 0.0
        %1093 = vmatprep.subr.mxu0 0.0
        %1094 = vmatpush1.msra.mxu0 0.0
        %1095 = vmatprep.mubr.f32.mxu0 0.0
        %1096 = vmatmul.mubr.f32.gmra.mrb[0].mxu0 %v1029
        %v1097 = vpop.f32.mrb[0].mxu0
        %v1098 = vadd.f32 0.0, %v1097
        %v1099 = vpop.f32.mrb[0].mxu0
        %1100 = vdwg.mxu0
        %v1102 = vsel %vm474, %v634, 0
        %1104 = vmatprep.subr.mxu0 0.0
        %1105 = vmatpush1.msra.mxu0 %v637
        %1106 = vmatprep.subr.mxu0 0.0
        %1107 = vmatpush1.msra.mxu0 %v638
        %1108 = vmatprep.subr.mxu0 0.0
        %1109 = vmatpush1.msra.mxu0 0.0
        %1110 = vmatprep.subr.mxu0 0.0
        %1111 = vmatpush1.msra.mxu0 0.0
        %1112 = vmatprep.subr.mxu0 0.0
        %1113 = vmatpush1.msra.mxu0 0.0
        %1114 = vmatprep.subr.mxu0 0.0
        %1115 = vmatpush1.msra.mxu0 0.0
        %1116 = vmatprep.subr.mxu0 0.0
        %1117 = vmatpush1.msra.mxu0 0.0
        %1118 = vmatprep.subr.mxu0 0.0
        %1119 = vmatpush1.msra.mxu0 0.0
        %1120 = vmatprep.subr.mxu0 0.0
        %1121 = vmatpush1.msra.mxu0 0.0
        %1122 = vmatprep.subr.mxu0 0.0
        %1123 = vmatpush1.msra.mxu0 0.0
        %1124 = vmatprep.subr.mxu0 0.0
        %1125 = vmatpush1.msra.mxu0 0.0
        %1126 = vmatprep.subr.mxu0 0.0
        %1127 = vmatpush1.msra.mxu0 0.0
        %1128 = vmatprep.subr.mxu0 0.0
        %1129 = vmatpush1.msra.mxu0 0.0
        %1130 = vmatprep.subr.mxu0 0.0
        %1131 = vmatpush1.msra.mxu0 0.0
        %1132 = vmatprep.subr.mxu0 0.0
        %1133 = vmatpush1.msra.mxu0 0.0
        %1134 = vmatprep.subr.mxu0 0.0
        %1135 = vmatpush1.msra.mxu0 0.0
        %1136 = vmatprep.subr.mxu0 0.0
        %1137 = vmatpush1.msra.mxu0 0.0
        %1138 = vmatprep.subr.mxu0 0.0
        %1139 = vmatpush1.msra.mxu0 0.0
        %1140 = vmatprep.subr.mxu0 0.0
        %1141 = vmatpush1.msra.mxu0 0.0
        %1142 = vmatprep.subr.mxu0 0.0
        %1143 = vmatpush1.msra.mxu0 0.0
        %1144 = vmatprep.subr.mxu0 0.0
        %1145 = vmatpush1.msra.mxu0 0.0
        %1146 = vmatprep.subr.mxu0 0.0
        %1147 = vmatpush1.msra.mxu0 0.0
        %1148 = vmatprep.subr.mxu0 0.0
        %1149 = vmatpush1.msra.mxu0 0.0
        %1150 = vmatprep.subr.mxu0 0.0
        %1151 = vmatpush1.msra.mxu0 0.0
        %1152 = vmatprep.subr.mxu0 0.0
        %1153 = vmatpush1.msra.mxu0 0.0
        %1154 = vmatprep.subr.mxu0 0.0
        %1155 = vmatpush1.msra.mxu0 0.0
        %1156 = vmatprep.subr.mxu0 0.0
        %1157 = vmatpush1.msra.mxu0 0.0
        %1158 = vmatprep.subr.mxu0 0.0
        %1159 = vmatpush1.msra.mxu0 0.0
        %1160 = vmatprep.subr.mxu0 0.0
        %1161 = vmatpush1.msra.mxu0 0.0
        %1162 = vmatprep.subr.mxu0 0.0
        %1163 = vmatpush1.msra.mxu0 0.0
        %1164 = vmatprep.subr.mxu0 0.0
        %1165 = vmatpush1.msra.mxu0 0.0
        %1166 = vmatprep.subr.mxu0 0.0
        %1167 = vmatpush1.msra.mxu0 0.0
        %1168 = vmatprep.mubr.f32.mxu0 0.0
        %1169 = vmatmul.mubr.f32.gmra.mrb[0].mxu0 %v1102
        %v1170 = vpop.f32.mrb[0].mxu0
        %v1171 = vadd.f32 %v1098, %v1170
        %v1172 = vpop.f32.mrb[0].mxu0
        %1173 = vdwg.mxu0
        %s1174 = scalar_lea.vmem %s1, 64
        %v1175 = vld [vmem:[%s1174] sm:$0xff]
        %v1176 = vld [vmem:[%s1174 + $0x8] sm:$0xff]
        %v1177 = vld [vmem:[%s1174 + $0x10] sm:$0xff]
        %v1178 = vld [vmem:[%s1174 + $0x18] sm:$0xff]
        %1179 = vmatprep.subr.mxu0 0.0
        %1180 = vmatpush1.msra.mxu0 %v1175
        %1181 = vmatprep.subr.mxu0 0.0
        %1182 = vmatpush1.msra.mxu0 %v1176
        %1183 = vmatprep.subr.mxu0 0.0
        %1184 = vmatpush1.msra.mxu0 %v1177
        %1185 = vmatprep.subr.mxu0 0.0
        %1186 = vmatpush1.msra.mxu0 %v1178
        %1187 = vmatprep.subr.mxu0 0.0
        %1188 = vmatpush1.msra.mxu0 0.0
        %1189 = vmatprep.subr.mxu0 0.0
        %1190 = vmatpush1.msra.mxu0 0.0
        %1191 = vmatprep.subr.mxu0 0.0
        %1192 = vmatpush1.msra.mxu0 0.0
        %1193 = vmatprep.subr.mxu0 0.0
        %1194 = vmatpush1.msra.mxu0 0.0
        %1195 = vmatprep.subr.mxu0 0.0
        %1196 = vmatpush1.msra.mxu0 0.0
        %1197 = vmatprep.subr.mxu0 0.0
        %1198 = vmatpush1.msra.mxu0 0.0
        %1199 = vmatprep.subr.mxu0 0.0
        %1200 = vmatpush1.msra.mxu0 0.0
        %1201 = vmatprep.subr.mxu0 0.0
        %1202 = vmatpush1.msra.mxu0 0.0
        %1203 = vmatprep.subr.mxu0 0.0
        %1204 = vmatpush1.msra.mxu0 0.0
        %1205 = vmatprep.subr.mxu0 0.0
        %1206 = vmatpush1.msra.mxu0 0.0
        %1207 = vmatprep.subr.mxu0 0.0
        %1208 = vmatpush1.msra.mxu0 0.0
        %1209 = vmatprep.subr.mxu0 0.0
        %1210 = vmatpush1.msra.mxu0 0.0
        %1211 = vmatprep.subr.mxu0 0.0
        %1212 = vmatpush1.msra.mxu0 0.0
        %1213 = vmatprep.subr.mxu0 0.0
        %1214 = vmatpush1.msra.mxu0 0.0
        %1215 = vmatprep.subr.mxu0 0.0
        %1216 = vmatpush1.msra.mxu0 0.0
        %1217 = vmatprep.subr.mxu0 0.0
        %1218 = vmatpush1.msra.mxu0 0.0
        %1219 = vmatprep.subr.mxu0 0.0
        %1220 = vmatpush1.msra.mxu0 0.0
        %1221 = vmatprep.subr.mxu0 0.0
        %1222 = vmatpush1.msra.mxu0 0.0
        %1223 = vmatprep.subr.mxu0 0.0
        %1224 = vmatpush1.msra.mxu0 0.0
        %1225 = vmatprep.subr.mxu0 0.0
        %1226 = vmatpush1.msra.mxu0 0.0
        %1227 = vmatprep.subr.mxu0 0.0
        %1228 = vmatpush1.msra.mxu0 0.0
        %1229 = vmatprep.subr.mxu0 0.0
        %1230 = vmatpush1.msra.mxu0 0.0
        %1231 = vmatprep.subr.mxu0 0.0
        %1232 = vmatpush1.msra.mxu0 0.0
        %1233 = vmatprep.subr.mxu0 0.0
        %1234 = vmatpush1.msra.mxu0 0.0
        %1235 = vmatprep.subr.mxu0 0.0
        %1236 = vmatpush1.msra.mxu0 0.0
        %1237 = vmatprep.subr.mxu0 0.0
        %1238 = vmatpush1.msra.mxu0 0.0
        %1239 = vmatprep.subr.mxu0 0.0
        %1240 = vmatpush1.msra.mxu0 0.0
        %1241 = vmatprep.subr.mxu0 0.0
        %1242 = vmatpush1.msra.mxu0 0.0
        %1243 = vmatprep.mubr.f32.mxu0 0.0
        %1244 = vmatmul.mubr.f32.gmra.mrb[0].mxu0 %v254
        %v1245 = vpop.f32.mrb[0].mxu0
        %v1246 = vadd.f32 0.0, %v1245
        %v1247 = vpop.f32.mrb[0].mxu0
        %1248 = vdwg.mxu0
        %s1249 = scalar_lea.vmem %s2, 64
        %v1250 = vld [vmem:[%s1249] sm:$0xff]
        %v1251 = vld [vmem:[%s1249 + $0x8] sm:$0xff]
        %v1252 = vld [vmem:[%s1249 + $0x10] sm:$0xff]
        %v1253 = vld [vmem:[%s1249 + $0x18] sm:$0xff]
        %1254 = vmatprep.subr.mxu0 0.0
        %1255 = vmatpush1.msra.mxu0 %v1250
        %1256 = vmatprep.subr.mxu0 0.0
        %1257 = vmatpush1.msra.mxu0 %v1251
        %1258 = vmatprep.subr.mxu0 0.0
        %1259 = vmatpush1.msra.mxu0 %v1252
        %1260 = vmatprep.subr.mxu0 0.0
        %1261 = vmatpush1.msra.mxu0 %v1253
        %1262 = vmatprep.subr.mxu0 0.0
        %1263 = vmatpush1.msra.mxu0 0.0
        %1264 = vmatprep.subr.mxu0 0.0
        %1265 = vmatpush1.msra.mxu0 0.0
        %1266 = vmatprep.subr.mxu0 0.0
        %1267 = vmatpush1.msra.mxu0 0.0
        %1268 = vmatprep.subr.mxu0 0.0
        %1269 = vmatpush1.msra.mxu0 0.0
        %1270 = vmatprep.subr.mxu0 0.0
        %1271 = vmatpush1.msra.mxu0 0.0
        %1272 = vmatprep.subr.mxu0 0.0
        %1273 = vmatpush1.msra.mxu0 0.0
        %1274 = vmatprep.subr.mxu0 0.0
        %1275 = vmatpush1.msra.mxu0 0.0
        %1276 = vmatprep.subr.mxu0 0.0
        %1277 = vmatpush1.msra.mxu0 0.0
        %1278 = vmatprep.subr.mxu0 0.0
        %1279 = vmatpush1.msra.mxu0 0.0
        %1280 = vmatprep.subr.mxu0 0.0
        %1281 = vmatpush1.msra.mxu0 0.0
        %1282 = vmatprep.subr.mxu0 0.0
        %1283 = vmatpush1.msra.mxu0 0.0
        %1284 = vmatprep.subr.mxu0 0.0
        %1285 = vmatpush1.msra.mxu0 0.0
        %1286 = vmatprep.subr.mxu0 0.0
        %1287 = vmatpush1.msra.mxu0 0.0
        %1288 = vmatprep.subr.mxu0 0.0
        %1289 = vmatpush1.msra.mxu0 0.0
        %1290 = vmatprep.subr.mxu0 0.0
        %1291 = vmatpush1.msra.mxu0 0.0
        %1292 = vmatprep.subr.mxu0 0.0
        %1293 = vmatpush1.msra.mxu0 0.0
        %1294 = vmatprep.subr.mxu0 0.0
        %1295 = vmatpush1.msra.mxu0 0.0
        %1296 = vmatprep.subr.mxu0 0.0
        %1297 = vmatpush1.msra.mxu0 0.0
        %1298 = vmatprep.subr.mxu0 0.0
        %1299 = vmatpush1.msra.mxu0 0.0
        %1300 = vmatprep.subr.mxu0 0.0
        %1301 = vmatpush1.msra.mxu0 0.0
        %1302 = vmatprep.subr.mxu0 0.0
        %1303 = vmatpush1.msra.mxu0 0.0
        %1304 = vmatprep.subr.mxu0 0.0
        %1305 = vmatpush1.msra.mxu0 0.0
        %1306 = vmatprep.subr.mxu0 0.0
        %1307 = vmatpush1.msra.mxu0 0.0
        %1308 = vmatprep.subr.mxu0 0.0
        %1309 = vmatpush1.msra.mxu0 0.0
        %1310 = vmatprep.subr.mxu0 0.0
        %1311 = vmatpush1.msra.mxu0 0.0
        %1312 = vmatprep.subr.mxu0 0.0
        %1313 = vmatpush1.msra.mxu0 0.0
        %1314 = vmatprep.subr.mxu0 0.0
        %1315 = vmatpush1.msra.mxu0 0.0
        %1316 = vmatprep.subr.mxu0 0.0
        %1317 = vmatpush1.msra.mxu0 0.0
        %1318 = vmatprep.mubr.f32.mxu0 0.0
        %1319 = vmatmul.mubr.f32.gmra.mrb[0].mxu0 %v254
        %v1320 = vpop.f32.mrb[0].mxu0
        %v1321 = vadd.f32 0.0, %v1320
        %v1322 = vpop.f32.mrb[0].mxu0
        %1323 = vdwg.mxu0
        %s1324 = scalar_lea.vmem %s3, 64
        %v1325 = vld [vmem:[%s1324] sm:$0xff]
        %v1326 = vld [vmem:[%s1324 + $0x8] sm:$0xff]
        %v1327 = vld [vmem:[%s1324 + $0x10] sm:$0xff]
        %v1328 = vld [vmem:[%s1324 + $0x18] sm:$0xff]
        %1329 = vmatprep.subr.mxu0 0.0
        %1330 = vmatpush1.msra.mxu0 %v1325
        %1331 = vmatprep.subr.mxu0 0.0
        %1332 = vmatpush1.msra.mxu0 %v1326
        %1333 = vmatprep.subr.mxu0 0.0
        %1334 = vmatpush1.msra.mxu0 %v1327
        %1335 = vmatprep.subr.mxu0 0.0
        %1336 = vmatpush1.msra.mxu0 %v1328
        %1337 = vmatprep.subr.mxu0 0.0
        %1338 = vmatpush1.msra.mxu0 0.0
        %1339 = vmatprep.subr.mxu0 0.0
        %1340 = vmatpush1.msra.mxu0 0.0
        %1341 = vmatprep.subr.mxu0 0.0
        %1342 = vmatpush1.msra.mxu0 0.0
        %1343 = vmatprep.subr.mxu0 0.0
        %1344 = vmatpush1.msra.mxu0 0.0
        %1345 = vmatprep.subr.mxu0 0.0
        %1346 = vmatpush1.msra.mxu0 0.0
        %1347 = vmatprep.subr.mxu0 0.0
        %1348 = vmatpush1.msra.mxu0 0.0
        %1349 = vmatprep.subr.mxu0 0.0
        %1350 = vmatpush1.msra.mxu0 0.0
        %1351 = vmatprep.subr.mxu0 0.0
        %1352 = vmatpush1.msra.mxu0 0.0
        %1353 = vmatprep.subr.mxu0 0.0
        %1354 = vmatpush1.msra.mxu0 0.0
        %1355 = vmatprep.subr.mxu0 0.0
        %1356 = vmatpush1.msra.mxu0 0.0
        %1357 = vmatprep.subr.mxu0 0.0
        %1358 = vmatpush1.msra.mxu0 0.0
        %1359 = vmatprep.subr.mxu0 0.0
        %1360 = vmatpush1.msra.mxu0 0.0
        %1361 = vmatprep.subr.mxu0 0.0
        %1362 = vmatpush1.msra.mxu0 0.0
        %1363 = vmatprep.subr.mxu0 0.0
        %1364 = vmatpush1.msra.mxu0 0.0
        %1365 = vmatprep.subr.mxu0 0.0
        %1366 = vmatpush1.msra.mxu0 0.0
        %1367 = vmatprep.subr.mxu0 0.0
        %1368 = vmatpush1.msra.mxu0 0.0
        %1369 = vmatprep.subr.mxu0 0.0
        %1370 = vmatpush1.msra.mxu0 0.0
        %1371 = vmatprep.subr.mxu0 0.0
        %1372 = vmatpush1.msra.mxu0 0.0
        %1373 = vmatprep.subr.mxu0 0.0
        %1374 = vmatpush1.msra.mxu0 0.0
        %1375 = vmatprep.subr.mxu0 0.0
        %1376 = vmatpush1.msra.mxu0 0.0
        %1377 = vmatprep.subr.mxu0 0.0
        %1378 = vmatpush1.msra.mxu0 0.0
        %1379 = vmatprep.subr.mxu0 0.0
        %1380 = vmatpush1.msra.mxu0 0.0
        %1381 = vmatprep.subr.mxu0 0.0
        %1382 = vmatpush1.msra.mxu0 0.0
        %1383 = vmatprep.subr.mxu0 0.0
        %1384 = vmatpush1.msra.mxu0 0.0
        %1385 = vmatprep.subr.mxu0 0.0
        %1386 = vmatpush1.msra.mxu0 0.0
        %1387 = vmatprep.subr.mxu0 0.0
        %1388 = vmatpush1.msra.mxu0 0.0
        %1389 = vmatprep.subr.mxu0 0.0
        %1390 = vmatpush1.msra.mxu0 0.0
        %1391 = vmatprep.subr.mxu0 0.0
        %1392 = vmatpush1.msra.mxu0 0.0
        %1393 = vmatprep.mubr.f32.mxu0 0.0
        %1394 = vmatmul.mubr.f32.gmra.mrb[0].mxu0 %v254
        %v1395 = vpop.f32.mrb[0].mxu0
        %v1396 = vadd.f32 0.0, %v1395
        %v1397 = vpop.f32.mrb[0].mxu0
        %1398 = vdwg.mxu0
        %v1400 = vsel %vm474, %v1246, 0
        %v1403 = vsel %vm474, %v1321, 0
        %1405 = vmatprep.subr.mxu0 0.0
        %1406 = vmatpush1.xpose.msra.mxu0 %v1403
        %1407 = vmatprep.subr.mxu0 0.0
        %1408 = vmatpush1.xpose.msra.mxu0 0.0
        %1409 = vmatprep.subr.mxu0 0.0
        %1410 = vmatpush1.xpose.msra.mxu0 0.0
        %1411 = vmatprep.subr.mxu0 0.0
        %1412 = vmatpush1.xpose.msra.mxu0 0.0
        %1413 = vmatprep.subr.mxu0 0.0
        %1414 = vmatpush1.xpose.msra.mxu0 0.0
        %1415 = vmatprep.subr.mxu0 0.0
        %1416 = vmatpush1.xpose.msra.mxu0 0.0
        %1417 = vmatprep.subr.mxu0 0.0
        %1418 = vmatpush1.xpose.msra.mxu0 0.0
        %1419 = vmatprep.subr.mxu0 0.0
        %1420 = vmatpush1.xpose.msra.mxu0 0.0
        %1421 = vmatprep.subr.mxu0 0.0
        %1422 = vmatpush1.xpose.msra.mxu0 0.0
        %1423 = vmatprep.subr.mxu0 0.0
        %1424 = vmatpush1.xpose.msra.mxu0 0.0
        %1425 = vmatprep.subr.mxu0 0.0
        %1426 = vmatpush1.xpose.msra.mxu0 0.0
        %1427 = vmatprep.subr.mxu0 0.0
        %1428 = vmatpush1.xpose.msra.mxu0 0.0
        %1429 = vmatprep.subr.mxu0 0.0
        %1430 = vmatpush1.xpose.msra.mxu0 0.0
        %1431 = vmatprep.subr.mxu0 0.0
        %1432 = vmatpush1.xpose.msra.mxu0 0.0
        %1433 = vmatprep.subr.mxu0 0.0
        %1434 = vmatpush1.xpose.msra.mxu0 0.0
        %1435 = vmatprep.subr.mxu0 0.0
        %1436 = vmatpush1.xpose.msra.mxu0 0.0
        %1437 = vmatprep.subr.mxu0 0.0
        %1438 = vmatpush1.xpose.msra.mxu0 0.0
        %1439 = vmatprep.subr.mxu0 0.0
        %1440 = vmatpush1.xpose.msra.mxu0 0.0
        %1441 = vmatprep.subr.mxu0 0.0
        %1442 = vmatpush1.xpose.msra.mxu0 0.0
        %1443 = vmatprep.subr.mxu0 0.0
        %1444 = vmatpush1.xpose.msra.mxu0 0.0
        %1445 = vmatprep.subr.mxu0 0.0
        %1446 = vmatpush1.xpose.msra.mxu0 0.0
        %1447 = vmatprep.subr.mxu0 0.0
        %1448 = vmatpush1.xpose.msra.mxu0 0.0
        %1449 = vmatprep.subr.mxu0 0.0
        %1450 = vmatpush1.xpose.msra.mxu0 0.0
        %1451 = vmatprep.subr.mxu0 0.0
        %1452 = vmatpush1.xpose.msra.mxu0 0.0
        %1453 = vmatprep.subr.mxu0 0.0
        %1454 = vmatpush1.xpose.msra.mxu0 0.0
        %1455 = vmatprep.subr.mxu0 0.0
        %1456 = vmatpush1.xpose.msra.mxu0 0.0
        %1457 = vmatprep.subr.mxu0 0.0
        %1458 = vmatpush1.xpose.msra.mxu0 0.0
        %1459 = vmatprep.subr.mxu0 0.0
        %1460 = vmatpush1.xpose.msra.mxu0 0.0
        %1461 = vmatprep.subr.mxu0 0.0
        %1462 = vmatpush1.xpose.msra.mxu0 0.0
        %1463 = vmatprep.subr.mxu0 0.0
        %1464 = vmatpush1.xpose.msra.mxu0 0.0
        %1465 = vmatprep.subr.mxu0 0.0
        %1466 = vmatpush1.xpose.msra.mxu0 0.0
        %1467 = vmatprep.subr.mxu0 0.0
        %1468 = vmatpush1.xpose.msra.mxu0 0.0
        %1469 = vmatprep.mubr.f32.mxu0 0.0
        %1470 = vmatmul.mubr.f32.gmra.mrb[0].mxu0 %v1400
        %v1471 = vpop.f32.mrb[0].mxu0
        %v1472 = vadd.f32 0.0, %v1471
        %v1473 = vpop.f32.mrb[0].mxu0
        %1474 = vdwg.mxu0
        %v1475 = vmul.f32 %v1472, 0.25
        %v1476 = vsel %vm552, %v1475, -inf
        %1477 = vmax.xlane.f32.xlu0 %v1476
        %v1478 = vpop.xlane.xlu0 %1477
        %v1479 = vsub.f32 %v1475, %v1478
        %v1480 = vmul.f32 %v1479, 1.442695
        %v1481 = vpow.pop %v1480
        %v1482 = vsel %vm552, %v1481, 0.0
        %1483 = vadd.xlane.f32.xlu0 %v1482
        %v1484 = vpop.xlane.xlu0 %1483
        %v1485 = vrcp.pop %v1484
        %v1486 = vmul.f32 %v1481, %v1485
        %v1488 = vsel %vm552, %v1486, 0
        %1490 = vmatprep.subr.mxu0 0.0
        %1491 = vmatpush1.msra.mxu0 %v1396
        %1492 = vmatprep.subr.mxu0 0.0
        %1493 = vmatpush1.msra.mxu0 0.0
        %1494 = vmatprep.subr.mxu0 0.0
        %1495 = vmatpush1.msra.mxu0 0.0
        %1496 = vmatprep.subr.mxu0 0.0
        %1497 = vmatpush1.msra.mxu0 0.0
        %1498 = vmatprep.subr.mxu0 0.0
        %1499 = vmatpush1.msra.mxu0 0.0
        %1500 = vmatprep.subr.mxu0 0.0
        %1501 = vmatpush1.msra.mxu0 0.0
        %1502 = vmatprep.subr.mxu0 0.0
        %1503 = vmatpush1.msra.mxu0 0.0
        %1504 = vmatprep.subr.mxu0 0.0
        %1505 = vmatpush1.msra.mxu0 0.0
        %1506 = vmatprep.subr.mxu0 0.0
        %1507 = vmatpush1.msra.mxu0 0.0
        %1508 = vmatprep.subr.mxu0 0.0
        %1509 = vmatpush1.msra.mxu0 0.0
        %1510 = vmatprep.subr.mxu0 0.0
        %1511 = vmatpush1.msra.mxu0 0.0
        %1512 = vmatprep.subr.mxu0 0.0
        %1513 = vmatpush1.msra.mxu0 0.0
        %1514 = vmatprep.subr.mxu0 0.0
        %1515 = vmatpush1.msra.mxu0 0.0
        %1516 = vmatprep.subr.mxu0 0.0
        %1517 = vmatpush1.msra.mxu0 0.0
        %1518 = vmatprep.subr.mxu0 0.0
        %1519 = vmatpush1.msra.mxu0 0.0
        %1520 = vmatprep.subr.mxu0 0.0
        %1521 = vmatpush1.msra.mxu0 0.0
        %1522 = vmatprep.subr.mxu0 0.0
        %1523 = vmatpush1.msra.mxu0 0.0
        %1524 = vmatprep.subr.mxu0 0.0
        %1525 = vmatpush1.msra.mxu0 0.0
        %1526 = vmatprep.subr.mxu0 0.0
        %1527 = vmatpush1.msra.mxu0 0.0
        %1528 = vmatprep.subr.mxu0 0.0
        %1529 = vmatpush1.msra.mxu0 0.0
        %1530 = vmatprep.subr.mxu0 0.0
        %1531 = vmatpush1.msra.mxu0 0.0
        %1532 = vmatprep.subr.mxu0 0.0
        %1533 = vmatpush1.msra.mxu0 0.0
        %1534 = vmatprep.subr.mxu0 0.0
        %1535 = vmatpush1.msra.mxu0 0.0
        %1536 = vmatprep.subr.mxu0 0.0
        %1537 = vmatpush1.msra.mxu0 0.0
        %1538 = vmatprep.subr.mxu0 0.0
        %1539 = vmatpush1.msra.mxu0 0.0
        %1540 = vmatprep.subr.mxu0 0.0
        %1541 = vmatpush1.msra.mxu0 0.0
        %1542 = vmatprep.subr.mxu0 0.0
        %1543 = vmatpush1.msra.mxu0 0.0
        %1544 = vmatprep.subr.mxu0 0.0
        %1545 = vmatpush1.msra.mxu0 0.0
        %1546 = vmatprep.subr.mxu0 0.0
        %1547 = vmatpush1.msra.mxu0 0.0
        %1548 = vmatprep.subr.mxu0 0.0
        %1549 = vmatpush1.msra.mxu0 0.0
        %1550 = vmatprep.subr.mxu0 0.0
        %1551 = vmatpush1.msra.mxu0 0.0
        %1552 = vmatprep.subr.mxu0 0.0
        %1553 = vmatpush1.msra.mxu0 0.0
        %1554 = vmatprep.mubr.f32.mxu0 0.0
        %1555 = vmatmul.mubr.f32.gmra.mrb[0].mxu0 %v1488
        %v1556 = vpop.f32.mrb[0].mxu0
        %v1557 = vadd.f32 0.0, %v1556
        %v1558 = vpop.f32.mrb[0].mxu0
        %1559 = vdwg.mxu0
        %s1560 = scalar_lea.vmem %s4, 32
        %v1561 = vld [vmem:[%s1560] sm:$0xff]
        %v1562 = vld [vmem:[%s1560 + $0x8] sm:$0xff]
        %v1564 = vsel %vm474, %v1557, 0
        %1566 = vmatprep.subr.mxu0 0.0
        %1567 = vmatpush1.msra.mxu0 %v1561
        %1568 = vmatprep.subr.mxu0 0.0
        %1569 = vmatpush1.msra.mxu0 %v1562
        %1570 = vmatprep.subr.mxu0 0.0
        %1571 = vmatpush1.msra.mxu0 0.0
        %1572 = vmatprep.subr.mxu0 0.0
        %1573 = vmatpush1.msra.mxu0 0.0
        %1574 = vmatprep.subr.mxu0 0.0
        %1575 = vmatpush1.msra.mxu0 0.0
        %1576 = vmatprep.subr.mxu0 0.0
        %1577 = vmatpush1.msra.mxu0 0.0
        %1578 = vmatprep.subr.mxu0 0.0
        %1579 = vmatpush1.msra.mxu0 0.0
        %1580 = vmatprep.subr.mxu0 0.0
        %1581 = vmatpush1.msra.mxu0 0.0
        %1582 = vmatprep.subr.mxu0 0.0
        %1583 = vmatpush1.msra.mxu0 0.0
        %1584 = vmatprep.subr.mxu0 0.0
        %1585 = vmatpush1.msra.mxu0 0.0
        %1586 = vmatprep.subr.mxu0 0.0
        %1587 = vmatpush1.msra.mxu0 0.0
        %1588 = vmatprep.subr.mxu0 0.0
        %1589 = vmatpush1.msra.mxu0 0.0
        %1590 = vmatprep.subr.mxu0 0.0
        %1591 = vmatpush1.msra.mxu0 0.0
        %1592 = vmatprep.subr.mxu0 0.0
        %1593 = vmatpush1.msra.mxu0 0.0
        %1594 = vmatprep.subr.mxu0 0.0
        %1595 = vmatpush1.msra.mxu0 0.0
        %1596 = vmatprep.subr.mxu0 0.0
        %1597 = vmatpush1.msra.mxu0 0.0
        %1598 = vmatprep.subr.mxu0 0.0
        %1599 = vmatpush1.msra.mxu0 0.0
        %1600 = vmatprep.subr.mxu0 0.0
        %1601 = vmatpush1.msra.mxu0 0.0
        %1602 = vmatprep.subr.mxu0 0.0
        %1603 = vmatpush1.msra.mxu0 0.0
        %1604 = vmatprep.subr.mxu0 0.0
        %1605 = vmatpush1.msra.mxu0 0.0
        %1606 = vmatprep.subr.mxu0 0.0
        %1607 = vmatpush1.msra.mxu0 0.0
        %1608 = vmatprep.subr.mxu0 0.0
        %1609 = vmatpush1.msra.mxu0 0.0
        %1610 = vmatprep.subr.mxu0 0.0
        %1611 = vmatpush1.msra.mxu0 0.0
        %1612 = vmatprep.subr.mxu0 0.0
        %1613 = vmatpush1.msra.mxu0 0.0
        %1614 = vmatprep.subr.mxu0 0.0
        %1615 = vmatpush1.msra.mxu0 0.0
        %1616 = vmatprep.subr.mxu0 0.0
        %1617 = vmatpush1.msra.mxu0 0.0
        %1618 = vmatprep.subr.mxu0 0.0
        %1619 = vmatpush1.msra.mxu0 0.0
        %1620 = vmatprep.subr.mxu0 0.0
        %1621 = vmatpush1.msra.mxu0 0.0
        %1622 = vmatprep.subr.mxu0 0.0
        %1623 = vmatpush1.msra.mxu0 0.0
        %1624 = vmatprep.subr.mxu0 0.0
        %1625 = vmatpush1.msra.mxu0 0.0
        %1626 = vmatprep.subr.mxu0 0.0
        %1627 = vmatpush1.msra.mxu0 0.0
        %1628 = vmatprep.subr.mxu0 0.0
        %1629 = vmatpush1.msra.mxu0 0.0
        %1630 = vmatprep.mubr.f32.mxu0 0.0
        %1631 = vmatmul.mubr.f32.gmra.mrb[0].mxu0 %v1564
        %v1632 = vpop.f32.mrb[0].mxu0
        %v1633 = vadd.f32 0.0, %v1632
        %v1634 = vpop.f32.mrb[0].mxu0
        %1635 = vdwg.mxu0
        %v1636 = vadd.f32 %v1171, %v1633
        %s1637 = scalar_lea.vmem %s1, 96
        %v1638 = vld [vmem:[%s1637] sm:$0xff]
        %v1639 = vld [vmem:[%s1637 + $0x8] sm:$0xff]
        %v1640 = vld [vmem:[%s1637 + $0x10] sm:$0xff]
        %v1641 = vld [vmem:[%s1637 + $0x18] sm:$0xff]
        %1642 = vmatprep.subr.mxu0 0.0
        %1643 = vmatpush1.msra.mxu0 %v1638
        %1644 = vmatprep.subr.mxu0 0.0
        %1645 = vmatpush1.msra.mxu0 %v1639
        %1646 = vmatprep.subr.mxu0 0.0
        %1647 = vmatpush1.msra.mxu0 %v1640
        %1648 = vmatprep.subr.mxu0 0.0
        %1649 = vmatpush1.msra.mxu0 %v1641
        %1650 = vmatprep.subr.mxu0 0.0
        %1651 = vmatpush1.msra.mxu0 0.0
        %1652 = vmatprep.subr.mxu0 0.0
        %1653 = vmatpush1.msra.mxu0 0.0
        %1654 = vmatprep.subr.mxu0 0.0
        %1655 = vmatpush1.msra.mxu0 0.0
        %1656 = vmatprep.subr.mxu0 0.0
        %1657 = vmatpush1.msra.mxu0 0.0
        %1658 = vmatprep.subr.mxu0 0.0
        %1659 = vmatpush1.msra.mxu0 0.0
        %1660 = vmatprep.subr.mxu0 0.0
        %1661 = vmatpush1.msra.mxu0 0.0
        %1662 = vmatprep.subr.mxu0 0.0
        %1663 = vmatpush1.msra.mxu0 0.0
        %1664 = vmatprep.subr.mxu0 0.0
        %1665 = vmatpush1.msra.mxu0 0.0
        %1666 = vmatprep.subr.mxu0 0.0
        %1667 = vmatpush1.msra.mxu0 0.0
        %1668 = vmatprep.subr.mxu0 0.0
        %1669 = vmatpush1.msra.mxu0 0.0
        %1670 = vmatprep.subr.mxu0 0.0
        %1671 = vmatpush1.msra.mxu0 0.0
        %1672 = vmatprep.subr.mxu0 0.0
        %1673 = vmatpush1.msra.mxu0 0.0
        %1674 = vmatprep.subr.mxu0 0.0
        %1675 = vmatpush1.msra.mxu0 0.0
        %1676 = vmatprep.subr.mxu0 0.0
        %1677 = vmatpush1.msra.mxu0 0.0
        %1678 = vmatprep.subr.mxu0 0.0
        %1679 = vmatpush1.msra.mxu0 0.0
        %1680 = vmatprep.subr.mxu0 0.0
        %1681 = vmatpush1.msra.mxu0 0.0
        %1682 = vmatprep.subr.mxu0 0.0
        %1683 = vmatpush1.msra.mxu0 0.0
        %1684 = vmatprep.subr.mxu0 0.0
        %1685 = vmatpush1.msra.mxu0 0.0
        %1686 = vmatprep.subr.mxu0 0.0
        %1687 = vmatpush1.msra.mxu0 0.0
        %1688 = vmatprep.subr.mxu0 0.0
        %1689 = vmatpush1.msra.mxu0 0.0
        %1690 = vmatprep.subr.mxu0 0.0
        %1691 = vmatpush1.msra.mxu0 0.0
        %1692 = vmatprep.subr.mxu0 0.0
        %1693 = vmatpush1.msra.mxu0 0.0
        %1694 = vmatprep.subr.mxu0 0.0
        %1695 = vmatpush1.msra.mxu0 0.0
        %1696 = vmatprep.subr.mxu0 0.0
        %1697 = vmatpush1.msra.mxu0 0.0
        %1698 = vmatprep.subr.mxu0 0.0
        %1699 = vmatpush1.msra.mxu0 0.0
        %1700 = vmatprep.subr.mxu0 0.0
        %1701 = vmatpush1.msra.mxu0 0.0
        %1702 = vmatprep.subr.mxu0 0.0
        %1703 = vmatpush1.msra.mxu0 0.0
        %1704 = vmatprep.subr.mxu0 0.0
        %1705 = vmatpush1.msra.mxu0 0.0
        %1706 = vmatprep.mubr.f32.mxu0 0.0
        %1707 = vmatmul.mubr.f32.gmra.mrb[0].mxu0 %v254
        %v1708 = vpop.f32.mrb[0].mxu0
        %v1709 = vadd.f32 0.0, %v1708
        %v1710 = vpop.f32.mrb[0].mxu0
        %1711 = vdwg.mxu0
        %s1712 = scalar_lea.vmem %s2, 96
        %v1713 = vld [vmem:[%s1712] sm:$0xff]
        %v1714 = vld [vmem:[%s1712 + $0x8] sm:$0xff]
        %v1715 = vld [vmem:[%s1712 + $0x10] sm:$0xff]
        %v1716 = vld [vmem:[%s1712 + $0x18] sm:$0xff]
        %1717 = vmatprep.subr.mxu0 0.0
        %1718 = vmatpush1.msra.mxu0 %v1713
        %1719 = vmatprep.subr.mxu0 0.0
        %1720 = vmatpush1.msra.mxu0 %v1714
        %1721 = vmatprep.subr.mxu0 0.0
        %1722 = vmatpush1.msra.mxu0 %v1715
        %1723 = vmatprep.subr.mxu0 0.0
        %1724 = vmatpush1.msra.mxu0 %v1716
        %1725 = vmatprep.subr.mxu0 0.0
        %1726 = vmatpush1.msra.mxu0 0.0
        %1727 = vmatprep.subr.mxu0 0.0
        %1728 = vmatpush1.msra.mxu0 0.0
        %1729 = vmatprep.subr.mxu0 0.0
        %1730 = vmatpush1.msra.mxu0 0.0
        %1731 = vmatprep.subr.mxu0 0.0
        %1732 = vmatpush1.msra.mxu0 0.0
        %1733 = vmatprep.subr.mxu0 0.0
        %1734 = vmatpush1.msra.mxu0 0.0
        %1735 = vmatprep.subr.mxu0 0.0
        %1736 = vmatpush1.msra.mxu0 0.0
        %1737 = vmatprep.subr.mxu0 0.0
        %1738 = vmatpush1.msra.mxu0 0.0
        %1739 = vmatprep.subr.mxu0 0.0
        %1740 = vmatpush1.msra.mxu0 0.0
        %1741 = vmatprep.subr.mxu0 0.0
        %1742 = vmatpush1.msra.mxu0 0.0
        %1743 = vmatprep.subr.mxu0 0.0
        %1744 = vmatpush1.msra.mxu0 0.0
        %1745 = vmatprep.subr.mxu0 0.0
        %1746 = vmatpush1.msra.mxu0 0.0
        %1747 = vmatprep.subr.mxu0 0.0
        %1748 = vmatpush1.msra.mxu0 0.0
        %1749 = vmatprep.subr.mxu0 0.0
        %1750 = vmatpush1.msra.mxu0 0.0
        %1751 = vmatprep.subr.mxu0 0.0
        %1752 = vmatpush1.msra.mxu0 0.0
        %1753 = vmatprep.subr.mxu0 0.0
        %1754 = vmatpush1.msra.mxu0 0.0
        %1755 = vmatprep.subr.mxu0 0.0
        %1756 = vmatpush1.msra.mxu0 0.0
        %1757 = vmatprep.subr.mxu0 0.0
        %1758 = vmatpush1.msra.mxu0 0.0
        %1759 = vmatprep.subr.mxu0 0.0
        %1760 = vmatpush1.msra.mxu0 0.0
        %1761 = vmatprep.subr.mxu0 0.0
        %1762 = vmatpush1.msra.mxu0 0.0
        %1763 = vmatprep.subr.mxu0 0.0
        %1764 = vmatpush1.msra.mxu0 0.0
        %1765 = vmatprep.subr.mxu0 0.0
        %1766 = vmatpush1.msra.mxu0 0.0
        %1767 = vmatprep.subr.mxu0 0.0
        %1768 = vmatpush1.msra.mxu0 0.0
        %1769 = vmatprep.subr.mxu0 0.0
        %1770 = vmatpush1.msra.mxu0 0.0
        %1771 = vmatprep.subr.mxu0 0.0
        %1772 = vmatpush1.msra.mxu0 0.0
        %1773 = vmatprep.subr.mxu0 0.0
        %1774 = vmatpush1.msra.mxu0 0.0
        %1775 = vmatprep.subr.mxu0 0.0
        %1776 = vmatpush1.msra.mxu0 0.0
        %1777 = vmatprep.subr.mxu0 0.0
        %1778 = vmatpush1.msra.mxu0 0.0
        %1779 = vmatprep.subr.mxu0 0.0
        %1780 = vmatpush1.msra.mxu0 0.0
        %1781 = vmatprep.mubr.f32.mxu0 0.0
        %1782 = vmatmul.mubr.f32.gmra.mrb[0].mxu0 %v254
        %v1783 = vpop.f32.mrb[0].mxu0
        %v1784 = vadd.f32 0.0, %v1783
        %v1785 = vpop.f32.mrb[0].mxu0
        %1786 = vdwg.mxu0
        %s1787 = scalar_lea.vmem %s3, 96
        %v1788 = vld [vmem:[%s1787] sm:$0xff]
        %v1789 = vld [vmem:[%s1787 + $0x8] sm:$0xff]
        %v1790 = vld [vmem:[%s1787 + $0x10] sm:$0xff]
        %v1791 = vld [vmem:[%s1787 + $0x18] sm:$0xff]
        %1792 = vmatprep.subr.mxu0 0.0
        %1793 = vmatpush1.msra.mxu0 %v1788
        %1794 = vmatprep.subr.mxu0 0.0
        %1795 = vmatpush1.msra.mxu0 %v1789
        %1796 = vmatprep.subr.mxu0 0.0
        %1797 = vmatpush1.msra.mxu0 %v1790
        %1798 = vmatprep.subr.mxu0 0.0
        %1799 = vmatpush1.msra.mxu0 %v1791
        %1800 = vmatprep.subr.mxu0 0.0
        %1801 = vmatpush1.msra.mxu0 0.0
        %1802 = vmatprep.subr.mxu0 0.0
        %1803 = vmatpush1.msra.mxu0 0.0
        %1804 = vmatprep.subr.mxu0 0.0
        %1805 = vmatpush1.msra.mxu0 0.0
        %1806 = vmatprep.subr.mxu0 0.0
        %1807 = vmatpush1.msra.mxu0 0.0
        %1808 = vmatprep.subr.mxu0 0.0
        %1809 = vmatpush1.msra.mxu0 0.0
        %1810 = vmatprep.subr.mxu0 0.0
        %1811 = vmatpush1.msra.mxu0 0.0
        %1812 = vmatprep.subr.mxu0 0.0
        %1813 = vmatpush1.msra.mxu0 0.0
        %1814 = vmatprep.subr.mxu0 0.0
        %1815 = vmatpush1.msra.mxu0 0.0
        %1816 = vmatprep.subr.mxu0 0.0
        %1817 = vmatpush1.msra.mxu0 0.0
        %1818 = vmatprep.subr.mxu0 0.0
        %1819 = vmatpush1.msra.mxu0 0.0
        %1820 = vmatprep.subr.mxu0 0.0
        %1821 = vmatpush1.msra.mxu0 0.0
        %1822 = vmatprep.subr.mxu0 0.0
        %1823 = vmatpush1.msra.mxu0 0.0
        %1824 = vmatprep.subr.mxu0 0.0
        %1825 = vmatpush1.msra.mxu0 0.0
        %1826 = vmatprep.subr.mxu0 0.0
        %1827 = vmatpush1.msra.mxu0 0.0
        %1828 = vmatprep.subr.mxu0 0.0
        %1829 = vmatpush1.msra.mxu0 0.0
        %1830 = vmatprep.subr.mxu0 0.0
        %1831 = vmatpush1.msra.mxu0 0.0
        %1832 = vmatprep.subr.mxu0 0.0
        %1833 = vmatpush1.msra.mxu0 0.0
        %1834 = vmatprep.subr.mxu0 0.0
        %1835 = vmatpush1.msra.mxu0 0.0
        %1836 = vmatprep.subr.mxu0 0.0
        %1837 = vmatpush1.msra.mxu0 0.0
        %1838 = vmatprep.subr.mxu0 0.0
        %1839 = vmatpush1.msra.mxu0 0.0
        %1840 = vmatprep.subr.mxu0 0.0
        %1841 = vmatpush1.msra.mxu0 0.0
        %1842 = vmatprep.subr.mxu0 0.0
        %1843 = vmatpush1.msra.mxu0 0.0
        %1844 = vmatprep.subr.mxu0 0.0
        %1845 = vmatpush1.msra.mxu0 0.0
        %1846 = vmatprep.subr.mxu0 0.0
        %1847 = vmatpush1.msra.mxu0 0.0
        %1848 = vmatprep.subr.mxu0 0.0
        %1849 = vmatpush1.msra.mxu0 0.0
        %1850 = vmatprep.subr.mxu0 0.0
        %1851 = vmatpush1.msra.mxu0 0.0
        %1852 = vmatprep.subr.mxu0 0.0
        %1853 = vmatpush1.msra.mxu0 0.0
        %1854 = vmatprep.subr.mxu0 0.0
        %1855 = vmatpush1.msra.mxu0 0.0
        %1856 = vmatprep.mubr.f32.mxu0 0.0
        %1857 = vmatmul.mubr.f32.gmra.mrb[0].mxu0 %v254
        %v1858 = vpop.f32.mrb[0].mxu0
        %v1859 = vadd.f32 0.0, %v1858
        %v1860 = vpop.f32.mrb[0].mxu0
        %1861 = vdwg.mxu0
        %v1863 = vsel %vm474, %v1709, 0
        %v1866 = vsel %vm474, %v1784, 0
        %1868 = vmatprep.subr.mxu0 0.0
        %1869 = vmatpush1.xpose.msra.mxu0 %v1866
        %1870 = vmatprep.subr.mxu0 0.0
        %1871 = vmatpush1.xpose.msra.mxu0 0.0
        %1872 = vmatprep.subr.mxu0 0.0
        %1873 = vmatpush1.xpose.msra.mxu0 0.0
        %1874 = vmatprep.subr.mxu0 0.0
        %1875 = vmatpush1.xpose.msra.mxu0 0.0
        %1876 = vmatprep.subr.mxu0 0.0
        %1877 = vmatpush1.xpose.msra.mxu0 0.0
        %1878 = vmatprep.subr.mxu0 0.0
        %1879 = vmatpush1.xpose.msra.mxu0 0.0
        %1880 = vmatprep.subr.mxu0 0.0
        %1881 = vmatpush1.xpose.msra.mxu0 0.0
        %1882 = vmatprep.subr.mxu0 0.0
        %1883 = vmatpush1.xpose.msra.mxu0 0.0
        %1884 = vmatprep.subr.mxu0 0.0
        %1885 = vmatpush1.xpose.msra.mxu0 0.0
        %1886 = vmatprep.subr.mxu0 0.0
        %1887 = vmatpush1.xpose.msra.mxu0 0.0
        %1888 = vmatprep.subr.mxu0 0.0
        %1889 = vmatpush1.xpose.msra.mxu0 0.0
        %1890 = vmatprep.subr.mxu0 0.0
        %1891 = vmatpush1.xpose.msra.mxu0 0.0
        %1892 = vmatprep.subr.mxu0 0.0
        %1893 = vmatpush1.xpose.msra.mxu0 0.0
        %1894 = vmatprep.subr.mxu0 0.0
        %1895 = vmatpush1.xpose.msra.mxu0 0.0
        %1896 = vmatprep.subr.mxu0 0.0
        %1897 = vmatpush1.xpose.msra.mxu0 0.0
        %1898 = vmatprep.subr.mxu0 0.0
        %1899 = vmatpush1.xpose.msra.mxu0 0.0
        %1900 = vmatprep.subr.mxu0 0.0
        %1901 = vmatpush1.xpose.msra.mxu0 0.0
        %1902 = vmatprep.subr.mxu0 0.0
        %1903 = vmatpush1.xpose.msra.mxu0 0.0
        %1904 = vmatprep.subr.mxu0 0.0
        %1905 = vmatpush1.xpose.msra.mxu0 0.0
        %1906 = vmatprep.subr.mxu0 0.0
        %1907 = vmatpush1.xpose.msra.mxu0 0.0
        %1908 = vmatprep.subr.mxu0 0.0
        %1909 = vmatpush1.xpose.msra.mxu0 0.0
        %1910 = vmatprep.subr.mxu0 0.0
        %1911 = vmatpush1.xpose.msra.mxu0 0.0
        %1912 = vmatprep.subr.mxu0 0.0
        %1913 = vmatpush1.xpose.msra.mxu0 0.0
        %1914 = vmatprep.subr.mxu0 0.0
        %1915 = vmatpush1.xpose.msra.mxu0 0.0
        %1916 = vmatprep.subr.mxu0 0.0
        %1917 = vmatpush1.xpose.msra.mxu0 0.0
        %1918 = vmatprep.subr.mxu0 0.0
        %1919 = vmatpush1.xpose.msra.mxu0 0.0
        %1920 = vmatprep.subr.mxu0 0.0
        %1921 = vmatpush1.xpose.msra.mxu0 0.0
        %1922 = vmatprep.subr.mxu0 0.0
        %1923 = vmatpush1.xpose.msra.mxu0 0.0
        %1924 = vmatprep.subr.mxu0 0.0
        %1925 = vmatpush1.xpose.msra.mxu0 0.0
        %1926 = vmatprep.subr.mxu0 0.0
        %1927 = vmatpush1.xpose.msra.mxu0 0.0
        %1928 = vmatprep.subr.mxu0 0.0
        %1929 = vmatpush1.xpose.msra.mxu0 0.0
        %1930 = vmatprep.subr.mxu0 0.0
        %1931 = vmatpush1.xpose.msra.mxu0 0.0
        %1932 = vmatprep.mubr.f32.mxu0 0.0
        %1933 = vmatmul.mubr.f32.gmra.mrb[0].mxu0 %v1863
        %v1934 = vpop.f32.mrb[0].mxu0
        %v1935 = vadd.f32 0.0, %v1934
        %v1936 = vpop.f32.mrb[0].mxu0
        %1937 = vdwg.mxu0
        %v1938 = vmul.f32 %v1935, 0.25
        %v1939 = vsel %vm552, %v1938, -inf
        %1940 = vmax.xlane.f32.xlu0 %v1939
        %v1941 = vpop.xlane.xlu0 %1940
        %v1942 = vsub.f32 %v1938, %v1941
        %v1943 = vmul.f32 %v1942, 1.442695
        %v1944 = vpow.pop %v1943
        %v1945 = vsel %vm552, %v1944, 0.0
        %1946 = vadd.xlane.f32.xlu0 %v1945
        %v1947 = vpop.xlane.xlu0 %1946
        %v1948 = vrcp.pop %v1947
        %v1949 = vmul.f32 %v1944, %v1948
        %v1951 = vsel %vm552, %v1949, 0
        %1953 = vmatprep.subr.mxu0 0.0
        %1954 = vmatpush1.msra.mxu0 %v1859
        %1955 = vmatprep.subr.mxu0 0.0
        %1956 = vmatpush1.msra.mxu0 0.0
        %1957 = vmatprep.subr.mxu0 0.0
        %1958 = vmatpush1.msra.mxu0 0.0
        %1959 = vmatprep.subr.mxu0 0.0
        %1960 = vmatpush1.msra.mxu0 0.0
        %1961 = vmatprep.subr.mxu0 0.0
        %1962 = vmatpush1.msra.mxu0 0.0
        %1963 = vmatprep.subr.mxu0 0.0
        %1964 = vmatpush1.msra.mxu0 0.0
        %1965 = vmatprep.subr.mxu0 0.0
        %1966 = vmatpush1.msra.mxu0 0.0
        %1967 = vmatprep.subr.mxu0 0.0
        %1968 = vmatpush1.msra.mxu0 0.0
        %1969 = vmatprep.subr.mxu0 0.0
        %1970 = vmatpush1.msra.mxu0 0.0
        %1971 = vmatprep.subr.mxu0 0.0
        %1972 = vmatpush1.msra.mxu0 0.0
        %1973 = vmatprep.subr.mxu0 0.0
        %1974 = vmatpush1.msra.mxu0 0.0
        %1975 = vmatprep.subr.mxu0 0.0
        %1976 = vmatpush1.msra.mxu0 0.0
        %1977 = vmatprep.subr.mxu0 0.0
        %1978 = vmatpush1.msra.mxu0 0.0
        %1979 = vmatprep.subr.mxu0 0.0
        %1980 = vmatpush1.msra.mxu0 0.0
        %1981 = vmatprep.subr.mxu0 0.0
        %1982 = vmatpush1.msra.mxu0 0.0
        %1983 = vmatprep.subr.mxu0 0.0
        %1984 = vmatpush1.msra.mxu0 0.0
        %1985 = vmatprep.subr.mxu0 0.0
        %1986 = vmatpush1.msra.mxu0 0.0
        %1987 = vmatprep.subr.mxu0 0.0
        %1988 = vmatpush1.msra.mxu0 0.0
        %1989 = vmatprep.subr.mxu0 0.0
        %1990 = vmatpush1.msra.mxu0 0.0
        %1991 = vmatprep.subr.mxu0 0.0
        %1992 = vmatpush1.msra.mxu0 0.0
        %1993 = vmatprep.subr.mxu0 0.0
        %1994 = vmatpush1.msra.mxu0 0.0
        %1995 = vmatprep.subr.mxu0 0.0
        %1996 = vmatpush1.msra.mxu0 0.0
        %1997 = vmatprep.subr.mxu0 0.0
        %1998 = vmatpush1.msra.mxu0 0.0
        %1999 = vmatprep.subr.mxu0 0.0
        %2000 = vmatpush1.msra.mxu0 0.0
        %2001 = vmatprep.subr.mxu0 0.0
        %2002 = vmatpush1.msra.mxu0 0.0
        %2003 = vmatprep.subr.mxu0 0.0
        %2004 = vmatpush1.msra.mxu0 0.0
        %2005 = vmatprep.subr.mxu0 0.0
        %2006 = vmatpush1.msra.mxu0 0.0
        %2007 = vmatprep.subr.mxu0 0.0
        %2008 = vmatpush1.msra.mxu0 0.0
        %2009 = vmatprep.subr.mxu0 0.0
        %2010 = vmatpush1.msra.mxu0 0.0
        %2011 = vmatprep.subr.mxu0 0.0
        %2012 = vmatpush1.msra.mxu0 0.0
        %2013 = vmatprep.subr.mxu0 0.0
        %2014 = vmatpush1.msra.mxu0 0.0
        %2015 = vmatprep.subr.mxu0 0.0
        %2016 = vmatpush1.msra.mxu0 0.0
        %2017 = vmatprep.mubr.f32.mxu0 0.0
        %2018 = vmatmul.mubr.f32.gmra.mrb[0].mxu0 %v1951
        %v2019 = vpop.f32.mrb[0].mxu0
        %v2020 = vadd.f32 0.0, %v2019
        %v2021 = vpop.f32.mrb[0].mxu0
        %2022 = vdwg.mxu0
        %s2023 = scalar_lea.vmem %s4, 48
        %v2024 = vld [vmem:[%s2023] sm:$0xff]
        %v2025 = vld [vmem:[%s2023 + $0x8] sm:$0xff]
        %v2027 = vsel %vm474, %v2020, 0
        %2029 = vmatprep.subr.mxu0 0.0
        %2030 = vmatpush1.msra.mxu0 %v2024
        %2031 = vmatprep.subr.mxu0 0.0
        %2032 = vmatpush1.msra.mxu0 %v2025
        %2033 = vmatprep.subr.mxu0 0.0
        %2034 = vmatpush1.msra.mxu0 0.0
        %2035 = vmatprep.subr.mxu0 0.0
        %2036 = vmatpush1.msra.mxu0 0.0
        %2037 = vmatprep.subr.mxu0 0.0
        %2038 = vmatpush1.msra.mxu0 0.0
        %2039 = vmatprep.subr.mxu0 0.0
        %2040 = vmatpush1.msra.mxu0 0.0
        %2041 = vmatprep.subr.mxu0 0.0
        %2042 = vmatpush1.msra.mxu0 0.0
        %2043 = vmatprep.subr.mxu0 0.0
        %2044 = vmatpush1.msra.mxu0 0.0
        %2045 = vmatprep.subr.mxu0 0.0
        %2046 = vmatpush1.msra.mxu0 0.0
        %2047 = vmatprep.subr.mxu0 0.0
        %2048 = vmatpush1.msra.mxu0 0.0
        %2049 = vmatprep.subr.mxu0 0.0
        %2050 = vmatpush1.msra.mxu0 0.0
        %2051 = vmatprep.subr.mxu0 0.0
        %2052 = vmatpush1.msra.mxu0 0.0
        %2053 = vmatprep.subr.mxu0 0.0
        %2054 = vmatpush1.msra.mxu0 0.0
        %2055 = vmatprep.subr.mxu0 0.0
        %2056 = vmatpush1.msra.mxu0 0.0
        %2057 = vmatprep.subr.mxu0 0.0
        %2058 = vmatpush1.msra.mxu0 0.0
        %2059 = vmatprep.subr.mxu0 0.0
        %2060 = vmatpush1.msra.mxu0 0.0
        %2061 = vmatprep.subr.mxu0 0.0
        %2062 = vmatpush1.msra.mxu0 0.0
        %2063 = vmatprep.subr.mxu0 0.0
        %2064 = vmatpush1.msra.mxu0 0.0
        %2065 = vmatprep.subr.mxu0 0.0
        %2066 = vmatpush1.msra.mxu0 0.0
        %2067 = vmatprep.subr.mxu0 0.0
        %2068 = vmatpush1.msra.mxu0 0.0
        %2069 = vmatprep.subr.mxu0 0.0
        %2070 = vmatpush1.msra.mxu0 0.0
        %2071 = vmatprep.subr.mxu0 0.0
        %2072 = vmatpush1.msra.mxu0 0.0
        %2073 = vmatprep.subr.mxu0 0.0
        %2074 = vmatpush1.msra.mxu0 0.0
        %2075 = vmatprep.subr.mxu0 0.0
        %2076 = vmatpush1.msra.mxu0 0.0
        %2077 = vmatprep.subr.mxu0 0.0
        %2078 = vmatpush1.msra.mxu0 0.0
        %2079 = vmatprep.subr.mxu0 0.0
        %2080 = vmatpush1.msra.mxu0 0.0
        %2081 = vmatprep.subr.mxu0 0.0
        %2082 = vmatpush1.msra.mxu0 0.0
        %2083 = vmatprep.subr.mxu0 0.0
        %2084 = vmatpush1.msra.mxu0 0.0
        %2085 = vmatprep.subr.mxu0 0.0
        %2086 = vmatpush1.msra.mxu0 0.0
        %2087 = vmatprep.subr.mxu0 0.0
        %2088 = vmatpush1.msra.mxu0 0.0
        %2089 = vmatprep.subr.mxu0 0.0
        %2090 = vmatpush1.msra.mxu0 0.0
        %2091 = vmatprep.subr.mxu0 0.0
        %2092 = vmatpush1.msra.mxu0 0.0
        %2093 = vmatprep.mubr.f32.mxu0 0.0
        %2094 = vmatmul.mubr.f32.gmra.mrb[0].mxu0 %v2027
        %v2095 = vpop.f32.mrb[0].mxu0
        %v2096 = vadd.f32 0.0, %v2095
        %v2097 = vpop.f32.mrb[0].mxu0
        %2098 = vdwg.mxu0
        %v2099 = vadd.f32 %v1636, %v2096
        %v2100 = vld [vmem:[%s5] sm:$0x1]
        %v2102 = vlaneseq
        %v2103 = vshrl.u32 %v2102, 7
        %v2104 = vsub.s32 0, %v2103
        %v2105 = vrot.slane %v2100, %v2104
        %v2107 = vadd.f32 %v2099, %v2105
        %2108 = vst.msk [vmem:[%s242] sm:$0xff] %vm252, %v2107
        %s2109 = sand.u32 %s159, 1
        %s2110 = scalar_lea.sflag [#allocation3], %s2109
        %s2111 = sand.u32 %s159, 1
        %s2112 = smul.addr %s2111, 8
        %s2113 = scalar_lea.vmem [#allocation2], %s2112
        // Predicated region
        $region45: #{tpu_custom_call.1} parent=43 // pred_check
          %p2114 = pneg %p169
        $region46: #{tpu_custom_call.1} parent=43 // pred_check_branch
          %2116 = sbr.rel (%p2114) target = $region48
        $region47: #{tpu_custom_call.1} parent=43 // pred_region
          %s2118 = ssub.s32 128, 128
          %2119 = vsyncadd %s2110, %s2118
          %s2120 = smul.addr %s20, 128
          %s2121 = scalar_lea.hbm %s6, %s2120
          %s2123 = sshll.u32 %s2113, 4
          %s2124 = int_to_ptr.vmem [resolvable:$true] %s2123
          %2126 = dma.vmem_to_hbm [thread:$0]  %s2124, 128, %s2121, %s2110
        $region48: #{tpu_custom_call.1} parent=43 // pred_fallthru
          _
      $region44: #{tpu_custom_call.1} parent=5 // pred_fallthru
        _
      %p2127 = scmp.le.s32.totalorder 2, %s15
      // Predicated region
      $region49: #{tpu_custom_call.1} parent=5 // pred_check
        %p2128 = pneg %p2127
      $region50: #{tpu_custom_call.1} parent=5 // pred_check_branch
        %2130 = sbr.rel (%p2128) target = $region52
      $region51: #{tpu_custom_call.1} parent=5 // pred_region
        %s2131 = ssub.s32 %s15, 2
        // Predicated region
        $region53: #{tpu_custom_call.1} parent=51 // pred_check
          %p2132 = pneg %p175
        $region54: #{tpu_custom_call.1} parent=51 // pred_check_branch
          %2134 = sbr.rel (%p2132) target = $region56
        $region55: #{tpu_custom_call.1} parent=51 // pred_region
          %s2135 = sand.u32 %s160, 1
          %s2136 = scalar_lea.sflag [#allocation3], %s2135
          %s2137 = sand.u32 %s160, 1
          %s2138 = smul.addr %s2137, 8
          %s2139 = scalar_lea.vmem [#allocation2], %s2138
          %2140 = dma.done %s2136, 128
        $region56: #{tpu_custom_call.1} parent=51 // pred_fallthru
          _
      $region52: #{tpu_custom_call.1} parent=5 // pred_fallthru
        _
    $region6: #{tpu_custom_call.1} parent=1 // loop_footer
      %s19 = sadd.s32 1, %s15
    $region7: #{tpu_custom_call.1} parent=1 // loop_footer_branch
      %14 = sbr.rel target = $region3
    $region8: #{tpu_custom_call.1} parent=1 // loop_exit
      _
    %2141 = vsyncpa [#allocation3], 1
    %s2142 = scalar_lea.sflag [#allocation3], 1
    %2143 = vsyncpa %s2142, 1

</llo_original>
